<compile_context>
chip_gen: v7x
topology: tpu7x:2x2x1
jax: 0.10.0
libtpu: 0.0.40
codegen_flags: <defaults>
</compile_context>

<pallas_src>
import functools

import jax
import jax.numpy as jnp
from jax import lax
from jax.experimental import pallas as pl
from jax.experimental.pallas import tpu as pltpu


def _round_up(x, m):
    return (x + m - 1) // m * m


def lstm_decoder_kernel(h0_ref, whh_ref, bias_ref, wlin_ref, blin_ref, out_ref,
                        *, hidden_pad, seq_len, unroll):
    """Full LSTM recurrence with the H->1 projection fused into each step.

    Gate order of whh_ref / bias_ref is [i, f, o, g] (reordered in the wrapper).

    h0_ref   : (B, Hp)      f32       initial hidden state, zero-padded to Hp lanes
    whh_ref  : (Hp, 4*Hp)   f32/bf16  W_hh^T, per-gate zero-padded to Hp lanes
    bias_ref : (1, 4*Hp)    f32       b_ih + b_hh, per-gate zero-padded
    wlin_ref : (1, Hp)      f32       Linear weight, zero-padded
    blin_ref : (1,)         f32       Linear bias (SMEM scalar)
    out_ref  : (B, T)       f32       decoded sequence, lane-dense (T on lanes)
    """
    Hp = hidden_pad
    B, T = out_ref.shape

    # ---- loop-invariant loads / broadcasts, hoisted out of the recurrence ----
    whh = whh_ref[...]                                       # (Hp, 4*Hp)
    bias_b = jnp.broadcast_to(bias_ref[...], (B, 4 * Hp))    # (B, 4*Hp)
    wlin_b = jnp.broadcast_to(wlin_ref[...], (B, Hp))        # (B, Hp)
    blin = blin_ref[0]                                       # scalar (SMEM)
    lane_t = lax.broadcasted_iota(jnp.int32, (B, T), 1)      # column indices

    h0 = h0_ref[...].astype(jnp.float32)
    c0 = jnp.zeros((B, Hp), jnp.float32)
    dec0 = jnp.zeros((B, T), jnp.float32)

    def step(t, carry):
        h, c, dec = carry
        # gates: (B, 4*Hp) = h @ W_hh^T + (b_ih + b_hh); the input term is zero.
        gates = jnp.dot(h.astype(whh.dtype), whh,
                        preferred_element_type=jnp.float32) + bias_b
        # Gate layout [i, f, o, g]; slices fall on 128-lane vreg boundaries.
        sig = jax.nn.sigmoid(gates[:, :3 * Hp])          # one EUP call for i, f, o
        i_g = sig[:, 0 * Hp:1 * Hp]
        f_g = sig[:, 1 * Hp:2 * Hp]
        o_g = sig[:, 2 * Hp:3 * Hp]
        g_g = jnp.tanh(gates[:, 3 * Hp:4 * Hp])
        c_new = f_g * c + i_g * g_g          # padded lanes stay exactly 0
        h_new = o_g * jnp.tanh(c_new)        # padded lanes stay exactly 0
        # Fused Linear(H -> 1): elementwise mul + lane reduce -> (B, 1).
        dec_t = jnp.sum(h_new * wlin_b, axis=1, keepdims=True) + blin
        dec = jnp.where(lane_t == t, dec_t, dec)   # scatter into column t (vreg select)
        return (h_new, c_new, dec)

    _, _, dec = lax.fori_loop(0, seq_len, step, (h0, c0, dec0), unroll=unroll)

    out_ref[...] = dec   # single lane-dense store


def lstm_decoder_pallas(hidden, whh, b_ih, b_hh, w_lin, b_lin, *, seq_len,
                        matmul_dtype=jnp.float32):
    """hidden: (B, H). Returns decoded: (B, seq_len).

    Set matmul_dtype=jnp.bfloat16 on v6e/v7x for a faster MXU path (gate math,
    state and accumulation stay f32); re-validate tolerances if you do.
    """
    B, H = hidden.shape
    Hp = _round_up(H, 128)

    # PyTorch gate order is [i, f, g, o]; reorder to [i, f, o, g] so the three
    # sigmoid gates are a contiguous lane block inside the kernel.
    gate_perm = jnp.array([0, 1, 3, 2], jnp.int32)

    # --- per-gate 128-lane padding of W_hh^T, bias, Linear weight, h0 ---------
    whh_t = jnp.asarray(whh, jnp.float32).T.reshape(H, 4, H)[:, gate_perm, :]   # (H,4,H)
    whh_pad = (jnp.zeros((Hp, 4, Hp), jnp.float32)
               .at[:H, :, :H].set(whh_t)
               .reshape(Hp, 4 * Hp)
               .astype(matmul_dtype))                                           # (Hp,4Hp)
    bias = (jnp.asarray(b_ih, jnp.float32)
            + jnp.asarray(b_hh, jnp.float32)).reshape(4, H)[gate_perm]          # (4,H)
    bias_pad = (jnp.zeros((4, Hp), jnp.float32)
                .at[:, :H].set(bias)
                .reshape(1, 4 * Hp))                                            # (1,4Hp)
    wlin_pad = (jnp.zeros((1, Hp), jnp.float32)
                .at[:, :H].set(jnp.asarray(w_lin, jnp.float32)))                # (1,Hp)
    blin = jnp.asarray(b_lin, jnp.float32).reshape(1)                           # (1,)
    h0_pad = (jnp.zeros((B, Hp), jnp.float32)
              .at[:, :H].set(jnp.asarray(hidden, jnp.float32)))                 # (B,Hp)

    unroll = True if seq_len <= 32 else 8
    kernel = functools.partial(lstm_decoder_kernel, hidden_pad=Hp,
                               seq_len=seq_len, unroll=unroll)

    vmem = pl.BlockSpec(memory_space=pltpu.MemorySpace.VMEM)
    smem = pl.BlockSpec(memory_space=pltpu.MemorySpace.SMEM)

    return pl.pallas_call(
        kernel,
        out_shape=jax.ShapeDtypeStruct((B, seq_len), jnp.float32),
        in_specs=[vmem, vmem, vmem, vmem, smem],
        out_specs=vmem,
    )(h0_pad, whh_pad, bias_pad, wlin_pad, blin)


def lstm_decoder_ref(hidden, whh, b_ih, b_hh, w_lin, b_lin, *, seq_len):
    """Pure-JAX reference (mirrors PyTorch nn.LSTM with zero inputs + nn.Linear)."""
    B, H = hidden.shape
    bias = b_ih + b_hh

    def step(carry, _):
        h, c = carry
        gates = h @ whh.T + bias
        i_g = jax.nn.sigmoid(gates[:, 0 * H:1 * H])
        f_g = jax.nn.sigmoid(gates[:, 1 * H:2 * H])
        g_g = jnp.tanh(gates[:, 2 * H:3 * H])
        o_g = jax.nn.sigmoid(gates[:, 3 * H:4 * H])
        c = f_g * c + i_g * g_g
        h = o_g * jnp.tanh(c)
        return (h, c), h

    (_, _), hs = lax.scan(step, (hidden, jnp.zeros_like(hidden)), None, length=seq_len)
    dec = jnp.einsum('tbh,oh->bt', hs, w_lin) + b_lin[0]          # (B, T)
    return dec


if __name__ == "__main__":
    # Small shapes consistent with the module: batch=2, seq=8, hidden=32, input_size=1.
    B, T, H, IN = 2, 8, 32, 1

    key = jax.random.PRNGKey(0)
    k_h, k_whh, k_bih, k_bhh, k_wl, k_bl = jax.random.split(key, 6)

    bound = 1.0 / jnp.sqrt(jnp.float32(H))
    # nn.LSTM parameters (weight_ih_l0 is multiplied by the all-zero decoder input,
    # so it is irrelevant to the forward pass and deliberately not materialized).
    whh = jax.random.uniform(k_whh, (4 * H, H), jnp.float32, -bound, bound)
    b_ih = jax.random.uniform(k_bih, (4 * H,), jnp.float32, -bound, bound)
    b_hh = jax.random.uniform(k_bhh, (4 * H,), jnp.float32, -bound, bound)
    # nn.Linear(hidden_size, input_size=1)
    w_lin = jax.random.uniform(k_wl, (IN, H), jnp.float32, -bound, bound)
    b_lin = jax.random.uniform(k_bl, (IN,), jnp.float32, -bound, bound)

    hidden = jax.random.normal(k_h, (B, H), jnp.float32)

    out = lstm_decoder_pallas(hidden, whh, b_ih, b_hh, w_lin, b_lin, seq_len=T)
    out = jax.block_until_ready(out)

    ref = lstm_decoder_ref(hidden, whh, b_ih, b_hh, w_lin, b_lin, seq_len=T)
    ref = jax.block_until_ready(ref)

    assert out.shape == (B, T), out.shape
    assert jnp.allclose(out, ref, atol=1e-5, rtol=1e-5), (out, ref)
    print("KERNEL_OK")
</pallas_src>

<mosaic_0001>
module attributes {stable_mosaic.version = 11 : i64} {
  func.func @lstm_decoder_kernel(%arg0: memref<2x128xf32, #tpu.memory_space<vmem>>, %arg1: memref<128x512xf32, #tpu.memory_space<vmem>>, %arg2: memref<1x512xf32, #tpu.memory_space<vmem>>, %arg3: memref<1x128xf32, #tpu.memory_space<vmem>>, %arg4: memref<1xf32, #tpu.memory_space<smem>>, %arg5: memref<2x8xf32, #tpu.memory_space<vmem>>) attributes {dimension_semantics = [], scalar_prefetch = 0 : i64, scratch_operands = 0 : i64, tpu.core_type = #tpu.core_type<tc>} {
    %c0 = arith.constant 0 : index
    %c0_0 = arith.constant 0 : index
    %0 = vector.load %arg1[%c0, %c0_0] : memref<128x512xf32, #tpu.memory_space<vmem>>, vector<128x512xf32>
    %c0_1 = arith.constant 0 : index
    %c0_2 = arith.constant 0 : index
    %1 = vector.load %arg2[%c0_1, %c0_2] : memref<1x512xf32, #tpu.memory_space<vmem>>, vector<1x512xf32>
    %2 = vector.shape_cast %1 : vector<1x512xf32> to vector<1x512xf32>
    %3 = vector.broadcast %2 : vector<1x512xf32> to vector<2x512xf32>
    %c0_3 = arith.constant 0 : index
    %c0_4 = arith.constant 0 : index
    %4 = vector.load %arg3[%c0_3, %c0_4] : memref<1x128xf32, #tpu.memory_space<vmem>>, vector<1x128xf32>
    %5 = vector.shape_cast %4 : vector<1x128xf32> to vector<1x128xf32>
    %6 = vector.broadcast %5 : vector<1x128xf32> to vector<2x128xf32>
    %c0_5 = arith.constant 0 : index
    %7 = memref.load %arg4[%c0_5] : memref<1xf32, #tpu.memory_space<smem>>
    %8 = tpu.iota {dimensions = array<i32: 1>} : vector<2x8xi32>
    %c0_6 = arith.constant 0 : index
    %c0_7 = arith.constant 0 : index
    %9 = vector.load %arg0[%c0_6, %c0_7] : memref<2x128xf32, #tpu.memory_space<vmem>>, vector<2x128xf32>
    %cst = arith.constant 0.000000e+00 : f32
    %10 = vector.broadcast %cst : f32 to vector<2x128xf32>
    %cst_8 = arith.constant 0.000000e+00 : f32
    %11 = vector.broadcast %cst_8 : f32 to vector<2x8xf32>
    %c0_i32 = arith.constant 0 : i32
    %cst_9 = arith.constant dense<0.000000e+00> : vector<2x512xf32>
    %12 = tpu.matmul %9, %0, %cst_9 {dimension_numbers = #tpu.dot_dimension_numbers<[1], [0], [0], [1], [0, 0, 1, 1], [], []>} : vector<2x128xf32>, vector<128x512xf32>, vector<2x512xf32> -> vector<2x512xf32>
    %13 = arith.addf %12, %3 : vector<2x512xf32>
    %14 = vector.extract_strided_slice %13 {offsets = [0, 0], sizes = [2, 384], strides = [1, 1]} : vector<2x512xf32> to vector<2x384xf32>
    %15 = arith.negf %14 : vector<2x384xf32>
    %16 = math.exp %15 : vector<2x384xf32>
    %cst_10 = arith.constant 1.000000e+00 : f32
    %17 = vector.broadcast %cst_10 : f32 to vector<2x384xf32>
    %18 = arith.addf %17, %16 : vector<2x384xf32>
    %19 = arith.divf %17, %18 : vector<2x384xf32>
    %20 = vector.extract_strided_slice %19 {offsets = [0, 0], sizes = [2, 128], strides = [1, 1]} : vector<2x384xf32> to vector<2x128xf32>
    %21 = vector.extract_strided_slice %19 {offsets = [0, 128], sizes = [2, 128], strides = [1, 1]} : vector<2x384xf32> to vector<2x128xf32>
    %22 = vector.extract_strided_slice %19 {offsets = [0, 256], sizes = [2, 128], strides = [1, 1]} : vector<2x384xf32> to vector<2x128xf32>
    %23 = vector.extract_strided_slice %13 {offsets = [0, 384], sizes = [2, 128], strides = [1, 1]} : vector<2x512xf32> to vector<2x128xf32>
    %24 = math.tanh %23 : vector<2x128xf32>
    %25 = arith.mulf %21, %10 : vector<2x128xf32>
    %26 = arith.mulf %20, %24 : vector<2x128xf32>
    %27 = arith.addf %25, %26 : vector<2x128xf32>
    %28 = math.tanh %27 : vector<2x128xf32>
    %29 = arith.mulf %22, %28 : vector<2x128xf32>
    %30 = arith.mulf %29, %6 : vector<2x128xf32>
    %cst_11 = arith.constant dense<0.000000e+00> : vector<2xf32>
    %31 = vector.multi_reduction <add>, %30, %cst_11 [1] : vector<2x128xf32> to vector<2xf32>
    %32 = vector.shape_cast %31 : vector<2xf32> to vector<2x1xf32>
    %33 = vector.broadcast %7 : f32 to vector<2x1xf32>
    %34 = arith.addf %32, %33 : vector<2x1xf32>
    %35 = vector.broadcast %c0_i32 : i32 to vector<2x8xi32>
    %36 = arith.cmpi eq, %8, %35 : vector<2x8xi32>
    %37 = vector.shape_cast %34 : vector<2x1xf32> to vector<2x1xf32>
    %38 = vector.broadcast %37 : vector<2x1xf32> to vector<2x8xf32>
    %39 = arith.select %36, %38, %11 : vector<2x8xi1>, vector<2x8xf32>
    %c1_i32 = arith.constant 1 : i32
    %cst_12 = arith.constant dense<0.000000e+00> : vector<2x512xf32>
    %40 = tpu.matmul %29, %0, %cst_12 {dimension_numbers = #tpu.dot_dimension_numbers<[1], [0], [0], [1], [0, 0, 1, 1], [], []>} : vector<2x128xf32>, vector<128x512xf32>, vector<2x512xf32> -> vector<2x512xf32>
    %41 = arith.addf %40, %3 : vector<2x512xf32>
    %42 = vector.extract_strided_slice %41 {offsets = [0, 0], sizes = [2, 384], strides = [1, 1]} : vector<2x512xf32> to vector<2x384xf32>
    %43 = arith.negf %42 : vector<2x384xf32>
    %44 = math.exp %43 : vector<2x384xf32>
    %cst_13 = arith.constant 1.000000e+00 : f32
    %45 = vector.broadcast %cst_13 : f32 to vector<2x384xf32>
    %46 = arith.addf %45, %44 : vector<2x384xf32>
    %47 = arith.divf %45, %46 : vector<2x384xf32>
    %48 = vector.extract_strided_slice %47 {offsets = [0, 0], sizes = [2, 128], strides = [1, 1]} : vector<2x384xf32> to vector<2x128xf32>
    %49 = vector.extract_strided_slice %47 {offsets = [0, 128], sizes = [2, 128], strides = [1, 1]} : vector<2x384xf32> to vector<2x128xf32>
    %50 = vector.extract_strided_slice %47 {offsets = [0, 256], sizes = [2, 128], strides = [1, 1]} : vector<2x384xf32> to vector<2x128xf32>
    %51 = vector.extract_strided_slice %41 {offsets = [0, 384], sizes = [2, 128], strides = [1, 1]} : vector<2x512xf32> to vector<2x128xf32>
    %52 = math.tanh %51 : vector<2x128xf32>
    %53 = arith.mulf %49, %27 : vector<2x128xf32>
    %54 = arith.mulf %48, %52 : vector<2x128xf32>
    %55 = arith.addf %53, %54 : vector<2x128xf32>
    %56 = math.tanh %55 : vector<2x128xf32>
    %57 = arith.mulf %50, %56 : vector<2x128xf32>
    %58 = arith.mulf %57, %6 : vector<2x128xf32>
    %cst_14 = arith.constant dense<0.000000e+00> : vector<2xf32>
    %59 = vector.multi_reduction <add>, %58, %cst_14 [1] : vector<2x128xf32> to vector<2xf32>
    %60 = vector.shape_cast %59 : vector<2xf32> to vector<2x1xf32>
    %61 = vector.broadcast %7 : f32 to vector<2x1xf32>
    %62 = arith.addf %60, %61 : vector<2x1xf32>
    %63 = vector.broadcast %c1_i32 : i32 to vector<2x8xi32>
    %64 = arith.cmpi eq, %8, %63 : vector<2x8xi32>
    %65 = vector.shape_cast %62 : vector<2x1xf32> to vector<2x1xf32>
    %66 = vector.broadcast %65 : vector<2x1xf32> to vector<2x8xf32>
    %67 = arith.select %64, %66, %39 : vector<2x8xi1>, vector<2x8xf32>
    %c2_i32 = arith.constant 2 : i32
    %cst_15 = arith.constant dense<0.000000e+00> : vector<2x512xf32>
    %68 = tpu.matmul %57, %0, %cst_15 {dimension_numbers = #tpu.dot_dimension_numbers<[1], [0], [0], [1], [0, 0, 1, 1], [], []>} : vector<2x128xf32>, vector<128x512xf32>, vector<2x512xf32> -> vector<2x512xf32>
    %69 = arith.addf %68, %3 : vector<2x512xf32>
    %70 = vector.extract_strided_slice %69 {offsets = [0, 0], sizes = [2, 384], strides = [1, 1]} : vector<2x512xf32> to vector<2x384xf32>
    %71 = arith.negf %70 : vector<2x384xf32>
    %72 = math.exp %71 : vector<2x384xf32>
    %cst_16 = arith.constant 1.000000e+00 : f32
    %73 = vector.broadcast %cst_16 : f32 to vector<2x384xf32>
    %74 = arith.addf %73, %72 : vector<2x384xf32>
    %75 = arith.divf %73, %74 : vector<2x384xf32>
    %76 = vector.extract_strided_slice %75 {offsets = [0, 0], sizes = [2, 128], strides = [1, 1]} : vector<2x384xf32> to vector<2x128xf32>
    %77 = vector.extract_strided_slice %75 {offsets = [0, 128], sizes = [2, 128], strides = [1, 1]} : vector<2x384xf32> to vector<2x128xf32>
    %78 = vector.extract_strided_slice %75 {offsets = [0, 256], sizes = [2, 128], strides = [1, 1]} : vector<2x384xf32> to vector<2x128xf32>
    %79 = vector.extract_strided_slice %69 {offsets = [0, 384], sizes = [2, 128], strides = [1, 1]} : vector<2x512xf32> to vector<2x128xf32>
    %80 = math.tanh %79 : vector<2x128xf32>
    %81 = arith.mulf %77, %55 : vector<2x128xf32>
    %82 = arith.mulf %76, %80 : vector<2x128xf32>
    %83 = arith.addf %81, %82 : vector<2x128xf32>
    %84 = math.tanh %83 : vector<2x128xf32>
    %85 = arith.mulf %78, %84 : vector<2x128xf32>
    %86 = arith.mulf %85, %6 : vector<2x128xf32>
    %cst_17 = arith.constant dense<0.000000e+00> : vector<2xf32>
    %87 = vector.multi_reduction <add>, %86, %cst_17 [1] : vector<2x128xf32> to vector<2xf32>
    %88 = vector.shape_cast %87 : vector<2xf32> to vector<2x1xf32>
    %89 = vector.broadcast %7 : f32 to vector<2x1xf32>
    %90 = arith.addf %88, %89 : vector<2x1xf32>
    %91 = vector.broadcast %c2_i32 : i32 to vector<2x8xi32>
    %92 = arith.cmpi eq, %8, %91 : vector<2x8xi32>
    %93 = vector.shape_cast %90 : vector<2x1xf32> to vector<2x1xf32>
    %94 = vector.broadcast %93 : vector<2x1xf32> to vector<2x8xf32>
    %95 = arith.select %92, %94, %67 : vector<2x8xi1>, vector<2x8xf32>
    %c3_i32 = arith.constant 3 : i32
    %cst_18 = arith.constant dense<0.000000e+00> : vector<2x512xf32>
    %96 = tpu.matmul %85, %0, %cst_18 {dimension_numbers = #tpu.dot_dimension_numbers<[1], [0], [0], [1], [0, 0, 1, 1], [], []>} : vector<2x128xf32>, vector<128x512xf32>, vector<2x512xf32> -> vector<2x512xf32>
    %97 = arith.addf %96, %3 : vector<2x512xf32>
    %98 = vector.extract_strided_slice %97 {offsets = [0, 0], sizes = [2, 384], strides = [1, 1]} : vector<2x512xf32> to vector<2x384xf32>
    %99 = arith.negf %98 : vector<2x384xf32>
    %100 = math.exp %99 : vector<2x384xf32>
    %cst_19 = arith.constant 1.000000e+00 : f32
    %101 = vector.broadcast %cst_19 : f32 to vector<2x384xf32>
    %102 = arith.addf %101, %100 : vector<2x384xf32>
    %103 = arith.divf %101, %102 : vector<2x384xf32>
    %104 = vector.extract_strided_slice %103 {offsets = [0, 0], sizes = [2, 128], strides = [1, 1]} : vector<2x384xf32> to vector<2x128xf32>
    %105 = vector.extract_strided_slice %103 {offsets = [0, 128], sizes = [2, 128], strides = [1, 1]} : vector<2x384xf32> to vector<2x128xf32>
    %106 = vector.extract_strided_slice %103 {offsets = [0, 256], sizes = [2, 128], strides = [1, 1]} : vector<2x384xf32> to vector<2x128xf32>
    %107 = vector.extract_strided_slice %97 {offsets = [0, 384], sizes = [2, 128], strides = [1, 1]} : vector<2x512xf32> to vector<2x128xf32>
    %108 = math.tanh %107 : vector<2x128xf32>
    %109 = arith.mulf %105, %83 : vector<2x128xf32>
    %110 = arith.mulf %104, %108 : vector<2x128xf32>
    %111 = arith.addf %109, %110 : vector<2x128xf32>
    %112 = math.tanh %111 : vector<2x128xf32>
    %113 = arith.mulf %106, %112 : vector<2x128xf32>
    %114 = arith.mulf %113, %6 : vector<2x128xf32>
    %cst_20 = arith.constant dense<0.000000e+00> : vector<2xf32>
    %115 = vector.multi_reduction <add>, %114, %cst_20 [1] : vector<2x128xf32> to vector<2xf32>
    %116 = vector.shape_cast %115 : vector<2xf32> to vector<2x1xf32>
    %117 = vector.broadcast %7 : f32 to vector<2x1xf32>
    %118 = arith.addf %116, %117 : vector<2x1xf32>
    %119 = vector.broadcast %c3_i32 : i32 to vector<2x8xi32>
    %120 = arith.cmpi eq, %8, %119 : vector<2x8xi32>
    %121 = vector.shape_cast %118 : vector<2x1xf32> to vector<2x1xf32>
    %122 = vector.broadcast %121 : vector<2x1xf32> to vector<2x8xf32>
    %123 = arith.select %120, %122, %95 : vector<2x8xi1>, vector<2x8xf32>
    %c4_i32 = arith.constant 4 : i32
    %cst_21 = arith.constant dense<0.000000e+00> : vector<2x512xf32>
    %124 = tpu.matmul %113, %0, %cst_21 {dimension_numbers = #tpu.dot_dimension_numbers<[1], [0], [0], [1], [0, 0, 1, 1], [], []>} : vector<2x128xf32>, vector<128x512xf32>, vector<2x512xf32> -> vector<2x512xf32>
    %125 = arith.addf %124, %3 : vector<2x512xf32>
    %126 = vector.extract_strided_slice %125 {offsets = [0, 0], sizes = [2, 384], strides = [1, 1]} : vector<2x512xf32> to vector<2x384xf32>
    %127 = arith.negf %126 : vector<2x384xf32>
    %128 = math.exp %127 : vector<2x384xf32>
    %cst_22 = arith.constant 1.000000e+00 : f32
    %129 = vector.broadcast %cst_22 : f32 to vector<2x384xf32>
    %130 = arith.addf %129, %128 : vector<2x384xf32>
    %131 = arith.divf %129, %130 : vector<2x384xf32>
    %132 = vector.extract_strided_slice %131 {offsets = [0, 0], sizes = [2, 128], strides = [1, 1]} : vector<2x384xf32> to vector<2x128xf32>
    %133 = vector.extract_strided_slice %131 {offsets = [0, 128], sizes = [2, 128], strides = [1, 1]} : vector<2x384xf32> to vector<2x128xf32>
    %134 = vector.extract_strided_slice %131 {offsets = [0, 256], sizes = [2, 128], strides = [1, 1]} : vector<2x384xf32> to vector<2x128xf32>
    %135 = vector.extract_strided_slice %125 {offsets = [0, 384], sizes = [2, 128], strides = [1, 1]} : vector<2x512xf32> to vector<2x128xf32>
    %136 = math.tanh %135 : vector<2x128xf32>
    %137 = arith.mulf %133, %111 : vector<2x128xf32>
    %138 = arith.mulf %132, %136 : vector<2x128xf32>
    %139 = arith.addf %137, %138 : vector<2x128xf32>
    %140 = math.tanh %139 : vector<2x128xf32>
    %141 = arith.mulf %134, %140 : vector<2x128xf32>
    %142 = arith.mulf %141, %6 : vector<2x128xf32>
    %cst_23 = arith.constant dense<0.000000e+00> : vector<2xf32>
    %143 = vector.multi_reduction <add>, %142, %cst_23 [1] : vector<2x128xf32> to vector<2xf32>
    %144 = vector.shape_cast %143 : vector<2xf32> to vector<2x1xf32>
    %145 = vector.broadcast %7 : f32 to vector<2x1xf32>
    %146 = arith.addf %144, %145 : vector<2x1xf32>
    %147 = vector.broadcast %c4_i32 : i32 to vector<2x8xi32>
    %148 = arith.cmpi eq, %8, %147 : vector<2x8xi32>
    %149 = vector.shape_cast %146 : vector<2x1xf32> to vector<2x1xf32>
    %150 = vector.broadcast %149 : vector<2x1xf32> to vector<2x8xf32>
    %151 = arith.select %148, %150, %123 : vector<2x8xi1>, vector<2x8xf32>
    %c5_i32 = arith.constant 5 : i32
    %cst_24 = arith.constant dense<0.000000e+00> : vector<2x512xf32>
    %152 = tpu.matmul %141, %0, %cst_24 {dimension_numbers = #tpu.dot_dimension_numbers<[1], [0], [0], [1], [0, 0, 1, 1], [], []>} : vector<2x128xf32>, vector<128x512xf32>, vector<2x512xf32> -> vector<2x512xf32>
    %153 = arith.addf %152, %3 : vector<2x512xf32>
    %154 = vector.extract_strided_slice %153 {offsets = [0, 0], sizes = [2, 384], strides = [1, 1]} : vector<2x512xf32> to vector<2x384xf32>
    %155 = arith.negf %154 : vector<2x384xf32>
    %156 = math.exp %155 : vector<2x384xf32>
    %cst_25 = arith.constant 1.000000e+00 : f32
    %157 = vector.broadcast %cst_25 : f32 to vector<2x384xf32>
    %158 = arith.addf %157, %156 : vector<2x384xf32>
    %159 = arith.divf %157, %158 : vector<2x384xf32>
    %160 = vector.extract_strided_slice %159 {offsets = [0, 0], sizes = [2, 128], strides = [1, 1]} : vector<2x384xf32> to vector<2x128xf32>
    %161 = vector.extract_strided_slice %159 {offsets = [0, 128], sizes = [2, 128], strides = [1, 1]} : vector<2x384xf32> to vector<2x128xf32>
    %162 = vector.extract_strided_slice %159 {offsets = [0, 256], sizes = [2, 128], strides = [1, 1]} : vector<2x384xf32> to vector<2x128xf32>
    %163 = vector.extract_strided_slice %153 {offsets = [0, 384], sizes = [2, 128], strides = [1, 1]} : vector<2x512xf32> to vector<2x128xf32>
    %164 = math.tanh %163 : vector<2x128xf32>
    %165 = arith.mulf %161, %139 : vector<2x128xf32>
    %166 = arith.mulf %160, %164 : vector<2x128xf32>
    %167 = arith.addf %165, %166 : vector<2x128xf32>
    %168 = math.tanh %167 : vector<2x128xf32>
    %169 = arith.mulf %162, %168 : vector<2x128xf32>
    %170 = arith.mulf %169, %6 : vector<2x128xf32>
    %cst_26 = arith.constant dense<0.000000e+00> : vector<2xf32>
    %171 = vector.multi_reduction <add>, %170, %cst_26 [1] : vector<2x128xf32> to vector<2xf32>
    %172 = vector.shape_cast %171 : vector<2xf32> to vector<2x1xf32>
    %173 = vector.broadcast %7 : f32 to vector<2x1xf32>
    %174 = arith.addf %172, %173 : vector<2x1xf32>
    %175 = vector.broadcast %c5_i32 : i32 to vector<2x8xi32>
    %176 = arith.cmpi eq, %8, %175 : vector<2x8xi32>
    %177 = vector.shape_cast %174 : vector<2x1xf32> to vector<2x1xf32>
    %178 = vector.broadcast %177 : vector<2x1xf32> to vector<2x8xf32>
    %179 = arith.select %176, %178, %151 : vector<2x8xi1>, vector<2x8xf32>
    %c6_i32 = arith.constant 6 : i32
    %cst_27 = arith.constant dense<0.000000e+00> : vector<2x512xf32>
    %180 = tpu.matmul %169, %0, %cst_27 {dimension_numbers = #tpu.dot_dimension_numbers<[1], [0], [0], [1], [0, 0, 1, 1], [], []>} : vector<2x128xf32>, vector<128x512xf32>, vector<2x512xf32> -> vector<2x512xf32>
    %181 = arith.addf %180, %3 : vector<2x512xf32>
    %182 = vector.extract_strided_slice %181 {offsets = [0, 0], sizes = [2, 384], strides = [1, 1]} : vector<2x512xf32> to vector<2x384xf32>
    %183 = arith.negf %182 : vector<2x384xf32>
    %184 = math.exp %183 : vector<2x384xf32>
    %cst_28 = arith.constant 1.000000e+00 : f32
    %185 = vector.broadcast %cst_28 : f32 to vector<2x384xf32>
    %186 = arith.addf %185, %184 : vector<2x384xf32>
    %187 = arith.divf %185, %186 : vector<2x384xf32>
    %188 = vector.extract_strided_slice %187 {offsets = [0, 0], sizes = [2, 128], strides = [1, 1]} : vector<2x384xf32> to vector<2x128xf32>
    %189 = vector.extract_strided_slice %187 {offsets = [0, 128], sizes = [2, 128], strides = [1, 1]} : vector<2x384xf32> to vector<2x128xf32>
    %190 = vector.extract_strided_slice %187 {offsets = [0, 256], sizes = [2, 128], strides = [1, 1]} : vector<2x384xf32> to vector<2x128xf32>
    %191 = vector.extract_strided_slice %181 {offsets = [0, 384], sizes = [2, 128], strides = [1, 1]} : vector<2x512xf32> to vector<2x128xf32>
    %192 = math.tanh %191 : vector<2x128xf32>
    %193 = arith.mulf %189, %167 : vector<2x128xf32>
    %194 = arith.mulf %188, %192 : vector<2x128xf32>
    %195 = arith.addf %193, %194 : vector<2x128xf32>
    %196 = math.tanh %195 : vector<2x128xf32>
    %197 = arith.mulf %190, %196 : vector<2x128xf32>
    %198 = arith.mulf %197, %6 : vector<2x128xf32>
    %cst_29 = arith.constant dense<0.000000e+00> : vector<2xf32>
    %199 = vector.multi_reduction <add>, %198, %cst_29 [1] : vector<2x128xf32> to vector<2xf32>
    %200 = vector.shape_cast %199 : vector<2xf32> to vector<2x1xf32>
    %201 = vector.broadcast %7 : f32 to vector<2x1xf32>
    %202 = arith.addf %200, %201 : vector<2x1xf32>
    %203 = vector.broadcast %c6_i32 : i32 to vector<2x8xi32>
    %204 = arith.cmpi eq, %8, %203 : vector<2x8xi32>
    %205 = vector.shape_cast %202 : vector<2x1xf32> to vector<2x1xf32>
    %206 = vector.broadcast %205 : vector<2x1xf32> to vector<2x8xf32>
    %207 = arith.select %204, %206, %179 : vector<2x8xi1>, vector<2x8xf32>
    %c7_i32 = arith.constant 7 : i32
    %cst_30 = arith.constant dense<0.000000e+00> : vector<2x512xf32>
    %208 = tpu.matmul %197, %0, %cst_30 {dimension_numbers = #tpu.dot_dimension_numbers<[1], [0], [0], [1], [0, 0, 1, 1], [], []>} : vector<2x128xf32>, vector<128x512xf32>, vector<2x512xf32> -> vector<2x512xf32>
    %209 = arith.addf %208, %3 : vector<2x512xf32>
    %210 = vector.extract_strided_slice %209 {offsets = [0, 0], sizes = [2, 384], strides = [1, 1]} : vector<2x512xf32> to vector<2x384xf32>
    %211 = arith.negf %210 : vector<2x384xf32>
    %212 = math.exp %211 : vector<2x384xf32>
    %cst_31 = arith.constant 1.000000e+00 : f32
    %213 = vector.broadcast %cst_31 : f32 to vector<2x384xf32>
    %214 = arith.addf %213, %212 : vector<2x384xf32>
    %215 = arith.divf %213, %214 : vector<2x384xf32>
    %216 = vector.extract_strided_slice %215 {offsets = [0, 0], sizes = [2, 128], strides = [1, 1]} : vector<2x384xf32> to vector<2x128xf32>
    %217 = vector.extract_strided_slice %215 {offsets = [0, 128], sizes = [2, 128], strides = [1, 1]} : vector<2x384xf32> to vector<2x128xf32>
    %218 = vector.extract_strided_slice %215 {offsets = [0, 256], sizes = [2, 128], strides = [1, 1]} : vector<2x384xf32> to vector<2x128xf32>
    %219 = vector.extract_strided_slice %209 {offsets = [0, 384], sizes = [2, 128], strides = [1, 1]} : vector<2x512xf32> to vector<2x128xf32>
    %220 = math.tanh %219 : vector<2x128xf32>
    %221 = arith.mulf %217, %195 : vector<2x128xf32>
    %222 = arith.mulf %216, %220 : vector<2x128xf32>
    %223 = arith.addf %221, %222 : vector<2x128xf32>
    %224 = math.tanh %223 : vector<2x128xf32>
    %225 = arith.mulf %218, %224 : vector<2x128xf32>
    %226 = arith.mulf %225, %6 : vector<2x128xf32>
    %cst_32 = arith.constant dense<0.000000e+00> : vector<2xf32>
    %227 = vector.multi_reduction <add>, %226, %cst_32 [1] : vector<2x128xf32> to vector<2xf32>
    %228 = vector.shape_cast %227 : vector<2xf32> to vector<2x1xf32>
    %229 = vector.broadcast %7 : f32 to vector<2x1xf32>
    %230 = arith.addf %228, %229 : vector<2x1xf32>
    %231 = vector.broadcast %c7_i32 : i32 to vector<2x8xi32>
    %232 = arith.cmpi eq, %8, %231 : vector<2x8xi32>
    %233 = vector.shape_cast %230 : vector<2x1xf32> to vector<2x1xf32>
    %234 = vector.broadcast %233 : vector<2x1xf32> to vector<2x8xf32>
    %235 = arith.select %232, %234, %207 : vector<2x8xi1>, vector<2x8xf32>
    %c8_i32 = arith.constant 8 : i32
    %c0_33 = arith.constant 0 : index
    %c0_34 = arith.constant 0 : index
    %236 = vector.load %arg5[%c0_33, %c0_34] : memref<2x8xf32, #tpu.memory_space<vmem>>, vector<2x8xf32>
    tpu.vector_store %arg5[%c0_33, %c0_34], %235 {strides = array<i32>} : memref<2x8xf32, #tpu.memory_space<vmem>>, vector<2x8xf32>,
    return
  }
}

</mosaic_0001>

<llo_original>
// kernel: tpu_custom_call.1
$region0: #{tpu_custom_call.1}
  #allocation0 [shape = 'u32[]', space=smem, size = 0x4, offset = 0x4, fixed_abs, tag = 'smem constant byte address 0x4 - core index']
  #allocation1 [shape = 'u32[144,128]{1,0:T(1,128)}', space=vmem, size = 0x12000, scoped, tag = 'internal scratch']
  #allocation2 [shape = 'f32[1]{0:T(128)S(6)}', space=smem, size = 0x200, scoped, tag = 'scoped memory for tpu_custom_call.1']
  %s0 = inlined_call_operand.vmem [shape: f32[2,128], index: 0, kind: input, shape index: {}]
  %s1 = inlined_call_operand.hbm [shape: f32[128,512], index: 1, kind: input, shape index: {}]
  %s2 = inlined_call_operand.vmem [shape: f32[1,512], index: 2, kind: input, shape index: {}]
  %s3 = inlined_call_operand.vmem [shape: f32[1,128], index: 3, kind: input, shape index: {}]
  %s4 = inlined_call_operand.<no memory space> [shape: f32[1], index: 4, kind: input, shape index: {}]
  %s5 = inlined_call_operand.hbm [shape: f32[2,8], index: 5, kind: output, shape index: {}]
  %s6 = sld [smem:[#allocation0]]
  $region34: #{tpu_custom_call.1} parent=0
    _
  %s8 = ssub.s32 1, %s6
  %s9 = scalar_select 0, %s8, %s6
  %10 = sst [smem:[#allocation2]] %s4
  $region1: #{tpu_custom_call.1} parent=0
    #allocation3 [shape = 'u8[262144]{0}', space=vmem, size = 0x40000, scoped, tag = 'input window, operand 1, single buffered']
    #allocation4 [shape = 's32[1]{0}', space=sflag, size = 0x4, scoped, tag = 'scoped memory for tpu_custom_call.1']
    #allocation5 [shape = 's32[1]{0}', space=sflag, size = 0x4, scoped, tag = 'scoped memory for tpu_custom_call.1']
    #allocation6 [shape = 'u8[1024]{0}', space=vmem, size = 0x400, scoped, tag = 'output window, operand 0, single buffered']
    %11 = vsyncpa [#allocation4], 0
    %12 = vsyncpa [#allocation5], 0
    // Predicated region
    $region2: #{tpu_custom_call.1} parent=1 // pred_check
      _
    $region3: #{tpu_custom_call.1} parent=1 // pred_check_branch
      %14 = sbr.rel (0) target = $region5
    $region4: #{tpu_custom_call.1} parent=1 // pred_region
      _
    $region5: #{tpu_custom_call.1} parent=1 // pred_fallthru
      _
    // Predicated region
    $region6: #{tpu_custom_call.1} parent=1 // pred_check
      _
    $region7: #{tpu_custom_call.1} parent=1 // pred_check_branch
      %16 = sbr.rel (0) target = $region9
    $region8: #{tpu_custom_call.1} parent=1 // pred_region
      %s18 = ssub.s32 8192, 8192
      %19 = vsyncadd [#allocation4], %s18
      %s20 = sshll.u32 [#allocation3], 4
      %s21 = int_to_ptr.vmem [resolvable:$true] %s20
      %26 = dma.hbm_to_vmem [thread:$0]  %s1, 8192, %s21, [#allocation4], 512, 512, 32
    $region9: #{tpu_custom_call.1} parent=1 // pred_fallthru
      _
    // Predicated region
    $region10: #{tpu_custom_call.1} parent=1 // pred_check
      _
    $region11: #{tpu_custom_call.1} parent=1 // pred_check_branch
      %28 = sbr.rel (0) target = $region13
    $region12: #{tpu_custom_call.1} parent=1 // pred_region
      _
    $region13: #{tpu_custom_call.1} parent=1 // pred_fallthru
      _
    // Predicated region
    $region14: #{tpu_custom_call.1} parent=1 // pred_check
      _
    $region15: #{tpu_custom_call.1} parent=1 // pred_check_branch
      %30 = sbr.rel (0) target = $region17
    $region16: #{tpu_custom_call.1} parent=1 // pred_region
      _
    $region17: #{tpu_custom_call.1} parent=1 // pred_fallthru
      _
    // Predicated region
    $region18: #{tpu_custom_call.1} parent=1 // pred_check
      _
    $region19: #{tpu_custom_call.1} parent=1 // pred_check_branch
      %32 = sbr.rel (0) target = $region21
    $region20: #{tpu_custom_call.1} parent=1 // pred_region
      _
    $region21: #{tpu_custom_call.1} parent=1 // pred_fallthru
      _
    // Predicated region
    $region22: #{tpu_custom_call.1} parent=1 // pred_check
      _
    $region23: #{tpu_custom_call.1} parent=1 // pred_check_branch
      %34 = sbr.rel (0) target = $region25
    $region24: #{tpu_custom_call.1} parent=1 // pred_region
      %35 = dma.done [#allocation4], 8192
    $region25: #{tpu_custom_call.1} parent=1 // pred_fallthru
      _
    %v36 = vld [vmem:[#allocation3] sm:$0xff]
    %v37 = vld [vmem:[#allocation3 + $0x8] sm:$0xff]
    %v38 = vld [vmem:[#allocation3 + $0x10] sm:$0xff]
    %v39 = vld [vmem:[#allocation3 + $0x18] sm:$0xff]
    %v40 = vld [vmem:[#allocation3 + $0x20] sm:$0xff]
    %v41 = vld [vmem:[#allocation3 + $0x28] sm:$0xff]
    %v42 = vld [vmem:[#allocation3 + $0x30] sm:$0xff]
    %v43 = vld [vmem:[#allocation3 + $0x38] sm:$0xff]
    %v44 = vld [vmem:[#allocation3 + $0x40] sm:$0xff]
    %v45 = vld [vmem:[#allocation3 + $0x48] sm:$0xff]
    %v46 = vld [vmem:[#allocation3 + $0x50] sm:$0xff]
    %v47 = vld [vmem:[#allocation3 + $0x58] sm:$0xff]
    %v48 = vld [vmem:[#allocation3 + $0x60] sm:$0xff]
    %v49 = vld [vmem:[#allocation3 + $0x68] sm:$0xff]
    %v50 = vld [vmem:[#allocation3 + $0x70] sm:$0xff]
    %v51 = vld [vmem:[#allocation3 + $0x78] sm:$0xff]
    %v52 = vld [vmem:[#allocation3 + $0x80] sm:$0xff]
    %v53 = vld [vmem:[#allocation3 + $0x88] sm:$0xff]
    %v54 = vld [vmem:[#allocation3 + $0x90] sm:$0xff]
    %v55 = vld [vmem:[#allocation3 + $0x98] sm:$0xff]
    %v56 = vld [vmem:[#allocation3 + $0xa0] sm:$0xff]
    %v57 = vld [vmem:[#allocation3 + $0xa8] sm:$0xff]
    %v58 = vld [vmem:[#allocation3 + $0xb0] sm:$0xff]
    %v59 = vld [vmem:[#allocation3 + $0xb8] sm:$0xff]
    %v60 = vld [vmem:[#allocation3 + $0xc0] sm:$0xff]
    %v61 = vld [vmem:[#allocation3 + $0xc8] sm:$0xff]
    %v62 = vld [vmem:[#allocation3 + $0xd0] sm:$0xff]
    %v63 = vld [vmem:[#allocation3 + $0xd8] sm:$0xff]
    %v64 = vld [vmem:[#allocation3 + $0xe0] sm:$0xff]
    %v65 = vld [vmem:[#allocation3 + $0xe8] sm:$0xff]
    %v66 = vld [vmem:[#allocation3 + $0xf0] sm:$0xff]
    %v67 = vld [vmem:[#allocation3 + $0xf8] sm:$0xff]
    %v68 = vld [vmem:[#allocation3 + $0x100] sm:$0xff]
    %v69 = vld [vmem:[#allocation3 + $0x108] sm:$0xff]
    %v70 = vld [vmem:[#allocation3 + $0x110] sm:$0xff]
    %v71 = vld [vmem:[#allocation3 + $0x118] sm:$0xff]
    %v72 = vld [vmem:[#allocation3 + $0x120] sm:$0xff]
    %v73 = vld [vmem:[#allocation3 + $0x128] sm:$0xff]
    %v74 = vld [vmem:[#allocation3 + $0x130] sm:$0xff]
    %v75 = vld [vmem:[#allocation3 + $0x138] sm:$0xff]
    %v76 = vld [vmem:[#allocation3 + $0x140] sm:$0xff]
    %v77 = vld [vmem:[#allocation3 + $0x148] sm:$0xff]
    %v78 = vld [vmem:[#allocation3 + $0x150] sm:$0xff]
    %v79 = vld [vmem:[#allocation3 + $0x158] sm:$0xff]
    %v80 = vld [vmem:[#allocation3 + $0x160] sm:$0xff]
    %v81 = vld [vmem:[#allocation3 + $0x168] sm:$0xff]
    %v82 = vld [vmem:[#allocation3 + $0x170] sm:$0xff]
    %v83 = vld [vmem:[#allocation3 + $0x178] sm:$0xff]
    %v84 = vld [vmem:[#allocation3 + $0x180] sm:$0xff]
    %v85 = vld [vmem:[#allocation3 + $0x188] sm:$0xff]
    %v86 = vld [vmem:[#allocation3 + $0x190] sm:$0xff]
    %v87 = vld [vmem:[#allocation3 + $0x198] sm:$0xff]
    %v88 = vld [vmem:[#allocation3 + $0x1a0] sm:$0xff]
    %v89 = vld [vmem:[#allocation3 + $0x1a8] sm:$0xff]
    %v90 = vld [vmem:[#allocation3 + $0x1b0] sm:$0xff]
    %v91 = vld [vmem:[#allocation3 + $0x1b8] sm:$0xff]
    %v92 = vld [vmem:[#allocation3 + $0x1c0] sm:$0xff]
    %v93 = vld [vmem:[#allocation3 + $0x1c8] sm:$0xff]
    %v94 = vld [vmem:[#allocation3 + $0x1d0] sm:$0xff]
    %v95 = vld [vmem:[#allocation3 + $0x1d8] sm:$0xff]
    %v96 = vld [vmem:[#allocation3 + $0x1e0] sm:$0xff]
    %v97 = vld [vmem:[#allocation3 + $0x1e8] sm:$0xff]
    %v98 = vld [vmem:[#allocation3 + $0x1f0] sm:$0xff]
    %v99 = vld [vmem:[#allocation3 + $0x1f8] sm:$0xff]
    %v100 = vld [vmem:[%s2] sm:$0xf]
    %v102 = vlaneseq
    %v103 = vshrl.u32 %v102, 7
    %v104 = vsub.s32 0, %v103
    %v105 = vrot.slane %v100, %v104
    %v106 = vlaneseq
    %v107 = vshrl.u32 %v106, 7
    %v108 = vsub.s32 1, %v107
    %v109 = vrot.slane %v100, %v108
    %v110 = vlaneseq
    %v111 = vshrl.u32 %v110, 7
    %v112 = vsub.s32 2, %v111
    %v113 = vrot.slane %v100, %v112
    %v114 = vlaneseq
    %v115 = vshrl.u32 %v114, 7
    %v116 = vsub.s32 3, %v115
    %v117 = vrot.slane %v100, %v116
    %v122 = vld [vmem:[%s3] sm:$0x1]
    %v124 = vlaneseq
    %v125 = vshrl.u32 %v124, 7
    %v126 = vsub.s32 0, %v125
    %v127 = vrot.slane %v122, %v126
    %s129 = sld [smem:[#allocation2]]
    %v130 = vlaneseq
    %v131 = vand.u32 %v130, 127
    %v132 = vld [vmem:[%s0] sm:$0x3]
    %133 = vmatprep.subr.mxu0 %v37
    %134 = vmatpush1.msra.mxu0 %v36
    %135 = vmatprep.subr.mxu0 %v41
    %136 = vmatpush1.msra.mxu0 %v40
    %137 = vmatprep.subr.mxu0 %v45
    %138 = vmatpush1.msra.mxu0 %v44
    %139 = vmatprep.subr.mxu0 %v49
    %140 = vmatpush1.msra.mxu0 %v48
    %141 = vmatprep.subr.mxu0 %v53
    %142 = vmatpush1.msra.mxu0 %v52
    %143 = vmatprep.subr.mxu0 %v57
    %144 = vmatpush1.msra.mxu0 %v56
    %145 = vmatprep.subr.mxu0 %v61
    %146 = vmatpush1.msra.mxu0 %v60
    %147 = vmatprep.subr.mxu0 %v65
    %148 = vmatpush1.msra.mxu0 %v64
    %149 = vmatprep.subr.mxu0 %v69
    %150 = vmatpush1.msra.mxu0 %v68
    %151 = vmatprep.subr.mxu0 %v73
    %152 = vmatpush1.msra.mxu0 %v72
    %153 = vmatprep.subr.mxu0 %v77
    %154 = vmatpush1.msra.mxu0 %v76
    %155 = vmatprep.subr.mxu0 %v81
    %156 = vmatpush1.msra.mxu0 %v80
    %157 = vmatprep.subr.mxu0 %v85
    %158 = vmatpush1.msra.mxu0 %v84
    %159 = vmatprep.subr.mxu0 %v89
    %160 = vmatpush1.msra.mxu0 %v88
    %161 = vmatprep.subr.mxu0 %v93
    %162 = vmatpush1.msra.mxu0 %v92
    %163 = vmatprep.subr.mxu0 %v97
    %164 = vmatpush1.msra.mxu0 %v96
    %165 = vmatprep.subr.mxu0 0.0
    %166 = vmatpush1.msra.mxu0 0.0
    %167 = vmatprep.subr.mxu0 0.0
    %168 = vmatpush1.msra.mxu0 0.0
    %169 = vmatprep.subr.mxu0 0.0
    %170 = vmatpush1.msra.mxu0 0.0
    %171 = vmatprep.subr.mxu0 0.0
    %172 = vmatpush1.msra.mxu0 0.0
    %173 = vmatprep.subr.mxu0 0.0
    %174 = vmatpush1.msra.mxu0 0.0
    %175 = vmatprep.subr.mxu0 0.0
    %176 = vmatpush1.msra.mxu0 0.0
    %177 = vmatprep.subr.mxu0 0.0
    %178 = vmatpush1.msra.mxu0 0.0
    %179 = vmatprep.subr.mxu0 0.0
    %180 = vmatpush1.msra.mxu0 0.0
    %181 = vmatprep.subr.mxu0 0.0
    %182 = vmatpush1.msra.mxu0 0.0
    %183 = vmatprep.subr.mxu0 0.0
    %184 = vmatpush1.msra.mxu0 0.0
    %185 = vmatprep.subr.mxu0 0.0
    %186 = vmatpush1.msra.mxu0 0.0
    %187 = vmatprep.subr.mxu0 0.0
    %188 = vmatpush1.msra.mxu0 0.0
    %189 = vmatprep.subr.mxu0 0.0
    %190 = vmatpush1.msra.mxu0 0.0
    %191 = vmatprep.subr.mxu0 0.0
    %192 = vmatpush1.msra.mxu0 0.0
    %193 = vmatprep.subr.mxu0 0.0
    %194 = vmatpush1.msra.mxu0 0.0
    %195 = vmatprep.subr.mxu0 0.0
    %196 = vmatpush1.msra.mxu0 0.0
    %197 = vmatprep.mubr.f32.mxu0 0.0
    %198 = vmatmul.mubr.f32.gmra.mrb[0].mxu0 %v132
    %v199 = vpop.f32.mrb[0].mxu0
    %v200 = vadd.f32 %v105, %v199
    %v201 = vpop.f32.mrb[0].mxu0
    %v202 = vadd.f32 %v109, %v201
    %203 = vdwg.mxu0
    %204 = vmatprep.subr.mxu0 %v39
    %205 = vmatpush1.msra.mxu0 %v38
    %206 = vmatprep.subr.mxu0 %v43
    %207 = vmatpush1.msra.mxu0 %v42
    %208 = vmatprep.subr.mxu0 %v47
    %209 = vmatpush1.msra.mxu0 %v46
    %210 = vmatprep.subr.mxu0 %v51
    %211 = vmatpush1.msra.mxu0 %v50
    %212 = vmatprep.subr.mxu0 %v55
    %213 = vmatpush1.msra.mxu0 %v54
    %214 = vmatprep.subr.mxu0 %v59
    %215 = vmatpush1.msra.mxu0 %v58
    %216 = vmatprep.subr.mxu0 %v63
    %217 = vmatpush1.msra.mxu0 %v62
    %218 = vmatprep.subr.mxu0 %v67
    %219 = vmatpush1.msra.mxu0 %v66
    %220 = vmatprep.subr.mxu0 %v71
    %221 = vmatpush1.msra.mxu0 %v70
    %222 = vmatprep.subr.mxu0 %v75
    %223 = vmatpush1.msra.mxu0 %v74
    %224 = vmatprep.subr.mxu0 %v79
    %225 = vmatpush1.msra.mxu0 %v78
    %226 = vmatprep.subr.mxu0 %v83
    %227 = vmatpush1.msra.mxu0 %v82
    %228 = vmatprep.subr.mxu0 %v87
    %229 = vmatpush1.msra.mxu0 %v86
    %230 = vmatprep.subr.mxu0 %v91
    %231 = vmatpush1.msra.mxu0 %v90
    %232 = vmatprep.subr.mxu0 %v95
    %233 = vmatpush1.msra.mxu0 %v94
    %234 = vmatprep.subr.mxu0 %v99
    %235 = vmatpush1.msra.mxu0 %v98
    %236 = vmatprep.subr.mxu0 0.0
    %237 = vmatpush1.msra.mxu0 0.0
    %238 = vmatprep.subr.mxu0 0.0
    %239 = vmatpush1.msra.mxu0 0.0
    %240 = vmatprep.subr.mxu0 0.0
    %241 = vmatpush1.msra.mxu0 0.0
    %242 = vmatprep.subr.mxu0 0.0
    %243 = vmatpush1.msra.mxu0 0.0
    %244 = vmatprep.subr.mxu0 0.0
    %245 = vmatpush1.msra.mxu0 0.0
    %246 = vmatprep.subr.mxu0 0.0
    %247 = vmatpush1.msra.mxu0 0.0
    %248 = vmatprep.subr.mxu0 0.0
    %249 = vmatpush1.msra.mxu0 0.0
    %250 = vmatprep.subr.mxu0 0.0
    %251 = vmatpush1.msra.mxu0 0.0
    %252 = vmatprep.subr.mxu0 0.0
    %253 = vmatpush1.msra.mxu0 0.0
    %254 = vmatprep.subr.mxu0 0.0
    %255 = vmatpush1.msra.mxu0 0.0
    %256 = vmatprep.subr.mxu0 0.0
    %257 = vmatpush1.msra.mxu0 0.0
    %258 = vmatprep.subr.mxu0 0.0
    %259 = vmatpush1.msra.mxu0 0.0
    %260 = vmatprep.subr.mxu0 0.0
    %261 = vmatpush1.msra.mxu0 0.0
    %262 = vmatprep.subr.mxu0 0.0
    %263 = vmatpush1.msra.mxu0 0.0
    %264 = vmatprep.subr.mxu0 0.0
    %265 = vmatpush1.msra.mxu0 0.0
    %266 = vmatprep.subr.mxu0 0.0
    %267 = vmatpush1.msra.mxu0 0.0
    %268 = vmatprep.mubr.f32.mxu0 0.0
    %269 = vmatmul.mubr.f32.gmra.mrb[0].mxu0 %v132
    %v270 = vpop.f32.mrb[0].mxu0
    %v271 = vadd.f32 %v113, %v270
    %v272 = vpop.f32.mrb[0].mxu0
    %v273 = vadd.f32 %v117, %v272
    %274 = vdwg.mxu0
    %v275 = vxor.u32 %v200, 2147483648
    %v276 = vxor.u32 %v202, 2147483648
    %v277 = vxor.u32 %v271, 2147483648
    %v278 = vmul.f32 %v275, 1.442695
    %v279 = vpow.pop %v278
    %v280 = vmul.f32 %v276, 1.442695
    %v281 = vpow.pop %v280
    %v282 = vmul.f32 %v277, 1.442695
    %v283 = vpow.pop %v282
    %v284 = vadd.f32 %v279, 1.0
    %v285 = vadd.f32 %v281, 1.0
    %v286 = vadd.f32 %v283, 1.0
    %v287 = vrcp.pop %v284
    %v288 = vmul.f32 1.0, %v287
    %v289 = vrcp.pop %v285
    %v290 = vmul.f32 1.0, %v289
    %v291 = vrcp.pop %v286
    %v292 = vmul.f32 1.0, %v291
    %v293 = vtanh.pop %v273
    %v294 = vmul.f32 %v290, 0.0
    %v295 = vmul.f32 %v288, %v293
    %v296 = vadd.f32 %v294, %v295
    %v297 = vtanh.pop %v296
    %v298 = vmul.f32 %v292, %v297
    %v299 = vmul.f32 %v298, %v127
    %vm300 = vcmask 1041408
    %v301 = vsel %vm300, %v299, 0.0
    %302 = vadd.xlane.f32.xlu0 %v301
    %v303 = vpop.xlane.xlu0 %302
    %v304 = vstv %s129
    %v305 = vadd.f32 %v303, %v304
    %vm306 = vcmp.eq.s32.totalorder %v131, 0
    %v307 = vsel %vm306, %v305, 0.0
    %308 = vmatprep.subr.mxu0 %v37
    %309 = vmatpush1.msra.mxu0 %v36
    %310 = vmatprep.subr.mxu0 %v41
    %311 = vmatpush1.msra.mxu0 %v40
    %312 = vmatprep.subr.mxu0 %v45
    %313 = vmatpush1.msra.mxu0 %v44
    %314 = vmatprep.subr.mxu0 %v49
    %315 = vmatpush1.msra.mxu0 %v48
    %316 = vmatprep.subr.mxu0 %v53
    %317 = vmatpush1.msra.mxu0 %v52
    %318 = vmatprep.subr.mxu0 %v57
    %319 = vmatpush1.msra.mxu0 %v56
    %320 = vmatprep.subr.mxu0 %v61
    %321 = vmatpush1.msra.mxu0 %v60
    %322 = vmatprep.subr.mxu0 %v65
    %323 = vmatpush1.msra.mxu0 %v64
    %324 = vmatprep.subr.mxu0 %v69
    %325 = vmatpush1.msra.mxu0 %v68
    %326 = vmatprep.subr.mxu0 %v73
    %327 = vmatpush1.msra.mxu0 %v72
    %328 = vmatprep.subr.mxu0 %v77
    %329 = vmatpush1.msra.mxu0 %v76
    %330 = vmatprep.subr.mxu0 %v81
    %331 = vmatpush1.msra.mxu0 %v80
    %332 = vmatprep.subr.mxu0 %v85
    %333 = vmatpush1.msra.mxu0 %v84
    %334 = vmatprep.subr.mxu0 %v89
    %335 = vmatpush1.msra.mxu0 %v88
    %336 = vmatprep.subr.mxu0 %v93
    %337 = vmatpush1.msra.mxu0 %v92
    %338 = vmatprep.subr.mxu0 %v97
    %339 = vmatpush1.msra.mxu0 %v96
    %340 = vmatprep.subr.mxu0 0.0
    %341 = vmatpush1.msra.mxu0 0.0
    %342 = vmatprep.subr.mxu0 0.0
    %343 = vmatpush1.msra.mxu0 0.0
    %344 = vmatprep.subr.mxu0 0.0
    %345 = vmatpush1.msra.mxu0 0.0
    %346 = vmatprep.subr.mxu0 0.0
    %347 = vmatpush1.msra.mxu0 0.0
    %348 = vmatprep.subr.mxu0 0.0
    %349 = vmatpush1.msra.mxu0 0.0
    %350 = vmatprep.subr.mxu0 0.0
    %351 = vmatpush1.msra.mxu0 0.0
    %352 = vmatprep.subr.mxu0 0.0
    %353 = vmatpush1.msra.mxu0 0.0
    %354 = vmatprep.subr.mxu0 0.0
    %355 = vmatpush1.msra.mxu0 0.0
    %356 = vmatprep.subr.mxu0 0.0
    %357 = vmatpush1.msra.mxu0 0.0
    %358 = vmatprep.subr.mxu0 0.0
    %359 = vmatpush1.msra.mxu0 0.0
    %360 = vmatprep.subr.mxu0 0.0
    %361 = vmatpush1.msra.mxu0 0.0
    %362 = vmatprep.subr.mxu0 0.0
    %363 = vmatpush1.msra.mxu0 0.0
    %364 = vmatprep.subr.mxu0 0.0
    %365 = vmatpush1.msra.mxu0 0.0
    %366 = vmatprep.subr.mxu0 0.0
    %367 = vmatpush1.msra.mxu0 0.0
    %368 = vmatprep.subr.mxu0 0.0
    %369 = vmatpush1.msra.mxu0 0.0
    %370 = vmatprep.subr.mxu0 0.0
    %371 = vmatpush1.msra.mxu0 0.0
    %372 = vmatprep.mubr.f32.mxu0 0.0
    %373 = vmatmul.mubr.f32.gmra.mrb[0].mxu0 %v298
    %v374 = vpop.f32.mrb[0].mxu0
    %v375 = vadd.f32 %v105, %v374
    %v376 = vpop.f32.mrb[0].mxu0
    %v377 = vadd.f32 %v109, %v376
    %378 = vdwg.mxu0
    %379 = vmatprep.subr.mxu0 %v39
    %380 = vmatpush1.msra.mxu0 %v38
    %381 = vmatprep.subr.mxu0 %v43
    %382 = vmatpush1.msra.mxu0 %v42
    %383 = vmatprep.subr.mxu0 %v47
    %384 = vmatpush1.msra.mxu0 %v46
    %385 = vmatprep.subr.mxu0 %v51
    %386 = vmatpush1.msra.mxu0 %v50
    %387 = vmatprep.subr.mxu0 %v55
    %388 = vmatpush1.msra.mxu0 %v54
    %389 = vmatprep.subr.mxu0 %v59
    %390 = vmatpush1.msra.mxu0 %v58
    %391 = vmatprep.subr.mxu0 %v63
    %392 = vmatpush1.msra.mxu0 %v62
    %393 = vmatprep.subr.mxu0 %v67
    %394 = vmatpush1.msra.mxu0 %v66
    %395 = vmatprep.subr.mxu0 %v71
    %396 = vmatpush1.msra.mxu0 %v70
    %397 = vmatprep.subr.mxu0 %v75
    %398 = vmatpush1.msra.mxu0 %v74
    %399 = vmatprep.subr.mxu0 %v79
    %400 = vmatpush1.msra.mxu0 %v78
    %401 = vmatprep.subr.mxu0 %v83
    %402 = vmatpush1.msra.mxu0 %v82
    %403 = vmatprep.subr.mxu0 %v87
    %404 = vmatpush1.msra.mxu0 %v86
    %405 = vmatprep.subr.mxu0 %v91
    %406 = vmatpush1.msra.mxu0 %v90
    %407 = vmatprep.subr.mxu0 %v95
    %408 = vmatpush1.msra.mxu0 %v94
    %409 = vmatprep.subr.mxu0 %v99
    %410 = vmatpush1.msra.mxu0 %v98
    %411 = vmatprep.subr.mxu0 0.0
    %412 = vmatpush1.msra.mxu0 0.0
    %413 = vmatprep.subr.mxu0 0.0
    %414 = vmatpush1.msra.mxu0 0.0
    %415 = vmatprep.subr.mxu0 0.0
    %416 = vmatpush1.msra.mxu0 0.0
    %417 = vmatprep.subr.mxu0 0.0
    %418 = vmatpush1.msra.mxu0 0.0
    %419 = vmatprep.subr.mxu0 0.0
    %420 = vmatpush1.msra.mxu0 0.0
    %421 = vmatprep.subr.mxu0 0.0
    %422 = vmatpush1.msra.mxu0 0.0
    %423 = vmatprep.subr.mxu0 0.0
    %424 = vmatpush1.msra.mxu0 0.0
    %425 = vmatprep.subr.mxu0 0.0
    %426 = vmatpush1.msra.mxu0 0.0
    %427 = vmatprep.subr.mxu0 0.0
    %428 = vmatpush1.msra.mxu0 0.0
    %429 = vmatprep.subr.mxu0 0.0
    %430 = vmatpush1.msra.mxu0 0.0
    %431 = vmatprep.subr.mxu0 0.0
    %432 = vmatpush1.msra.mxu0 0.0
    %433 = vmatprep.subr.mxu0 0.0
    %434 = vmatpush1.msra.mxu0 0.0
    %435 = vmatprep.subr.mxu0 0.0
    %436 = vmatpush1.msra.mxu0 0.0
    %437 = vmatprep.subr.mxu0 0.0
    %438 = vmatpush1.msra.mxu0 0.0
    %439 = vmatprep.subr.mxu0 0.0
    %440 = vmatpush1.msra.mxu0 0.0
    %441 = vmatprep.subr.mxu0 0.0
    %442 = vmatpush1.msra.mxu0 0.0
    %443 = vmatprep.mubr.f32.mxu0 0.0
    %444 = vmatmul.mubr.f32.gmra.mrb[0].mxu0 %v298
    %v445 = vpop.f32.mrb[0].mxu0
    %v446 = vadd.f32 %v113, %v445
    %v447 = vpop.f32.mrb[0].mxu0
    %v448 = vadd.f32 %v117, %v447
    %449 = vdwg.mxu0
    %v450 = vxor.u32 %v375, 2147483648
    %v451 = vxor.u32 %v377, 2147483648
    %v452 = vxor.u32 %v446, 2147483648
    %v453 = vmul.f32 %v450, 1.442695
    %v454 = vpow.pop %v453
    %v455 = vmul.f32 %v451, 1.442695
    %v456 = vpow.pop %v455
    %v457 = vmul.f32 %v452, 1.442695
    %v458 = vpow.pop %v457
    %v459 = vadd.f32 %v454, 1.0
    %v460 = vadd.f32 %v456, 1.0
    %v461 = vadd.f32 %v458, 1.0
    %v462 = vrcp.pop %v459
    %v463 = vmul.f32 1.0, %v462
    %v464 = vrcp.pop %v460
    %v465 = vmul.f32 1.0, %v464
    %v466 = vrcp.pop %v461
    %v467 = vmul.f32 1.0, %v466
    %v468 = vtanh.pop %v448
    %v469 = vmul.f32 %v465, %v296
    %v470 = vmul.f32 %v463, %v468
    %v471 = vadd.f32 %v469, %v470
    %v472 = vtanh.pop %v471
    %v473 = vmul.f32 %v467, %v472
    %v474 = vmul.f32 %v473, %v127
    %v475 = vsel %vm300, %v474, 0.0
    %476 = vadd.xlane.f32.xlu0 %v475
    %v477 = vpop.xlane.xlu0 %476
    %v478 = vadd.f32 %v477, %v304
    %vm479 = vcmp.eq.s32.totalorder %v131, 1
    %v480 = vsel %vm479, %v478, %v307
    %481 = vmatprep.subr.mxu0 %v37
    %482 = vmatpush1.msra.mxu0 %v36
    %483 = vmatprep.subr.mxu0 %v41
    %484 = vmatpush1.msra.mxu0 %v40
    %485 = vmatprep.subr.mxu0 %v45
    %486 = vmatpush1.msra.mxu0 %v44
    %487 = vmatprep.subr.mxu0 %v49
    %488 = vmatpush1.msra.mxu0 %v48
    %489 = vmatprep.subr.mxu0 %v53
    %490 = vmatpush1.msra.mxu0 %v52
    %491 = vmatprep.subr.mxu0 %v57
    %492 = vmatpush1.msra.mxu0 %v56
    %493 = vmatprep.subr.mxu0 %v61
    %494 = vmatpush1.msra.mxu0 %v60
    %495 = vmatprep.subr.mxu0 %v65
    %496 = vmatpush1.msra.mxu0 %v64
    %497 = vmatprep.subr.mxu0 %v69
    %498 = vmatpush1.msra.mxu0 %v68
    %499 = vmatprep.subr.mxu0 %v73
    %500 = vmatpush1.msra.mxu0 %v72
    %501 = vmatprep.subr.mxu0 %v77
    %502 = vmatpush1.msra.mxu0 %v76
    %503 = vmatprep.subr.mxu0 %v81
    %504 = vmatpush1.msra.mxu0 %v80
    %505 = vmatprep.subr.mxu0 %v85
    %506 = vmatpush1.msra.mxu0 %v84
    %507 = vmatprep.subr.mxu0 %v89
    %508 = vmatpush1.msra.mxu0 %v88
    %509 = vmatprep.subr.mxu0 %v93
    %510 = vmatpush1.msra.mxu0 %v92
    %511 = vmatprep.subr.mxu0 %v97
    %512 = vmatpush1.msra.mxu0 %v96
    %513 = vmatprep.subr.mxu0 0.0
    %514 = vmatpush1.msra.mxu0 0.0
    %515 = vmatprep.subr.mxu0 0.0
    %516 = vmatpush1.msra.mxu0 0.0
    %517 = vmatprep.subr.mxu0 0.0
    %518 = vmatpush1.msra.mxu0 0.0
    %519 = vmatprep.subr.mxu0 0.0
    %520 = vmatpush1.msra.mxu0 0.0
    %521 = vmatprep.subr.mxu0 0.0
    %522 = vmatpush1.msra.mxu0 0.0
    %523 = vmatprep.subr.mxu0 0.0
    %524 = vmatpush1.msra.mxu0 0.0
    %525 = vmatprep.subr.mxu0 0.0
    %526 = vmatpush1.msra.mxu0 0.0
    %527 = vmatprep.subr.mxu0 0.0
    %528 = vmatpush1.msra.mxu0 0.0
    %529 = vmatprep.subr.mxu0 0.0
    %530 = vmatpush1.msra.mxu0 0.0
    %531 = vmatprep.subr.mxu0 0.0
    %532 = vmatpush1.msra.mxu0 0.0
    %533 = vmatprep.subr.mxu0 0.0
    %534 = vmatpush1.msra.mxu0 0.0
    %535 = vmatprep.subr.mxu0 0.0
    %536 = vmatpush1.msra.mxu0 0.0
    %537 = vmatprep.subr.mxu0 0.0
    %538 = vmatpush1.msra.mxu0 0.0
    %539 = vmatprep.subr.mxu0 0.0
    %540 = vmatpush1.msra.mxu0 0.0
    %541 = vmatprep.subr.mxu0 0.0
    %542 = vmatpush1.msra.mxu0 0.0
    %543 = vmatprep.subr.mxu0 0.0
    %544 = vmatpush1.msra.mxu0 0.0
    %545 = vmatprep.mubr.f32.mxu0 0.0
    %546 = vmatmul.mubr.f32.gmra.mrb[0].mxu0 %v473
    %v547 = vpop.f32.mrb[0].mxu0
    %v548 = vadd.f32 %v105, %v547
    %v549 = vpop.f32.mrb[0].mxu0
    %v550 = vadd.f32 %v109, %v549
    %551 = vdwg.mxu0
    %552 = vmatprep.subr.mxu0 %v39
    %553 = vmatpush1.msra.mxu0 %v38
    %554 = vmatprep.subr.mxu0 %v43
    %555 = vmatpush1.msra.mxu0 %v42
    %556 = vmatprep.subr.mxu0 %v47
    %557 = vmatpush1.msra.mxu0 %v46
    %558 = vmatprep.subr.mxu0 %v51
    %559 = vmatpush1.msra.mxu0 %v50
    %560 = vmatprep.subr.mxu0 %v55
    %561 = vmatpush1.msra.mxu0 %v54
    %562 = vmatprep.subr.mxu0 %v59
    %563 = vmatpush1.msra.mxu0 %v58
    %564 = vmatprep.subr.mxu0 %v63
    %565 = vmatpush1.msra.mxu0 %v62
    %566 = vmatprep.subr.mxu0 %v67
    %567 = vmatpush1.msra.mxu0 %v66
    %568 = vmatprep.subr.mxu0 %v71
    %569 = vmatpush1.msra.mxu0 %v70
    %570 = vmatprep.subr.mxu0 %v75
    %571 = vmatpush1.msra.mxu0 %v74
    %572 = vmatprep.subr.mxu0 %v79
    %573 = vmatpush1.msra.mxu0 %v78
    %574 = vmatprep.subr.mxu0 %v83
    %575 = vmatpush1.msra.mxu0 %v82
    %576 = vmatprep.subr.mxu0 %v87
    %577 = vmatpush1.msra.mxu0 %v86
    %578 = vmatprep.subr.mxu0 %v91
    %579 = vmatpush1.msra.mxu0 %v90
    %580 = vmatprep.subr.mxu0 %v95
    %581 = vmatpush1.msra.mxu0 %v94
    %582 = vmatprep.subr.mxu0 %v99
    %583 = vmatpush1.msra.mxu0 %v98
    %584 = vmatprep.subr.mxu0 0.0
    %585 = vmatpush1.msra.mxu0 0.0
    %586 = vmatprep.subr.mxu0 0.0
    %587 = vmatpush1.msra.mxu0 0.0
    %588 = vmatprep.subr.mxu0 0.0
    %589 = vmatpush1.msra.mxu0 0.0
    %590 = vmatprep.subr.mxu0 0.0
    %591 = vmatpush1.msra.mxu0 0.0
    %592 = vmatprep.subr.mxu0 0.0
    %593 = vmatpush1.msra.mxu0 0.0
    %594 = vmatprep.subr.mxu0 0.0
    %595 = vmatpush1.msra.mxu0 0.0
    %596 = vmatprep.subr.mxu0 0.0
    %597 = vmatpush1.msra.mxu0 0.0
    %598 = vmatprep.subr.mxu0 0.0
    %599 = vmatpush1.msra.mxu0 0.0
    %600 = vmatprep.subr.mxu0 0.0
    %601 = vmatpush1.msra.mxu0 0.0
    %602 = vmatprep.subr.mxu0 0.0
    %603 = vmatpush1.msra.mxu0 0.0
    %604 = vmatprep.subr.mxu0 0.0
    %605 = vmatpush1.msra.mxu0 0.0
    %606 = vmatprep.subr.mxu0 0.0
    %607 = vmatpush1.msra.mxu0 0.0
    %608 = vmatprep.subr.mxu0 0.0
    %609 = vmatpush1.msra.mxu0 0.0
    %610 = vmatprep.subr.mxu0 0.0
    %611 = vmatpush1.msra.mxu0 0.0
    %612 = vmatprep.subr.mxu0 0.0
    %613 = vmatpush1.msra.mxu0 0.0
    %614 = vmatprep.subr.mxu0 0.0
    %615 = vmatpush1.msra.mxu0 0.0
    %616 = vmatprep.mubr.f32.mxu0 0.0
    %617 = vmatmul.mubr.f32.gmra.mrb[0].mxu0 %v473
    %v618 = vpop.f32.mrb[0].mxu0
    %v619 = vadd.f32 %v113, %v618
    %v620 = vpop.f32.mrb[0].mxu0
    %v621 = vadd.f32 %v117, %v620
    %622 = vdwg.mxu0
    %v623 = vxor.u32 %v548, 2147483648
    %v624 = vxor.u32 %v550, 2147483648
    %v625 = vxor.u32 %v619, 2147483648
    %v626 = vmul.f32 %v623, 1.442695
    %v627 = vpow.pop %v626
    %v628 = vmul.f32 %v624, 1.442695
    %v629 = vpow.pop %v628
    %v630 = vmul.f32 %v625, 1.442695
    %v631 = vpow.pop %v630
    %v632 = vadd.f32 %v627, 1.0
    %v633 = vadd.f32 %v629, 1.0
    %v634 = vadd.f32 %v631, 1.0
    %v635 = vrcp.pop %v632
    %v636 = vmul.f32 1.0, %v635
    %v637 = vrcp.pop %v633
    %v638 = vmul.f32 1.0, %v637
    %v639 = vrcp.pop %v634
    %v640 = vmul.f32 1.0, %v639
    %v641 = vtanh.pop %v621
    %v642 = vmul.f32 %v638, %v471
    %v643 = vmul.f32 %v636, %v641
    %v644 = vadd.f32 %v642, %v643
    %v645 = vtanh.pop %v644
    %v646 = vmul.f32 %v640, %v645
    %v647 = vmul.f32 %v646, %v127
    %v648 = vsel %vm300, %v647, 0.0
    %649 = vadd.xlane.f32.xlu0 %v648
    %v650 = vpop.xlane.xlu0 %649
    %v651 = vadd.f32 %v650, %v304
    %vm652 = vcmp.eq.s32.totalorder %v131, 2
    %v653 = vsel %vm652, %v651, %v480
    %654 = vmatprep.subr.mxu0 %v37
    %655 = vmatpush1.msra.mxu0 %v36
    %656 = vmatprep.subr.mxu0 %v41
    %657 = vmatpush1.msra.mxu0 %v40
    %658 = vmatprep.subr.mxu0 %v45
    %659 = vmatpush1.msra.mxu0 %v44
    %660 = vmatprep.subr.mxu0 %v49
    %661 = vmatpush1.msra.mxu0 %v48
    %662 = vmatprep.subr.mxu0 %v53
    %663 = vmatpush1.msra.mxu0 %v52
    %664 = vmatprep.subr.mxu0 %v57
    %665 = vmatpush1.msra.mxu0 %v56
    %666 = vmatprep.subr.mxu0 %v61
    %667 = vmatpush1.msra.mxu0 %v60
    %668 = vmatprep.subr.mxu0 %v65
    %669 = vmatpush1.msra.mxu0 %v64
    %670 = vmatprep.subr.mxu0 %v69
    %671 = vmatpush1.msra.mxu0 %v68
    %672 = vmatprep.subr.mxu0 %v73
    %673 = vmatpush1.msra.mxu0 %v72
    %674 = vmatprep.subr.mxu0 %v77
    %675 = vmatpush1.msra.mxu0 %v76
    %676 = vmatprep.subr.mxu0 %v81
    %677 = vmatpush1.msra.mxu0 %v80
    %678 = vmatprep.subr.mxu0 %v85
    %679 = vmatpush1.msra.mxu0 %v84
    %680 = vmatprep.subr.mxu0 %v89
    %681 = vmatpush1.msra.mxu0 %v88
    %682 = vmatprep.subr.mxu0 %v93
    %683 = vmatpush1.msra.mxu0 %v92
    %684 = vmatprep.subr.mxu0 %v97
    %685 = vmatpush1.msra.mxu0 %v96
    %686 = vmatprep.subr.mxu0 0.0
    %687 = vmatpush1.msra.mxu0 0.0
    %688 = vmatprep.subr.mxu0 0.0
    %689 = vmatpush1.msra.mxu0 0.0
    %690 = vmatprep.subr.mxu0 0.0
    %691 = vmatpush1.msra.mxu0 0.0
    %692 = vmatprep.subr.mxu0 0.0
    %693 = vmatpush1.msra.mxu0 0.0
    %694 = vmatprep.subr.mxu0 0.0
    %695 = vmatpush1.msra.mxu0 0.0
    %696 = vmatprep.subr.mxu0 0.0
    %697 = vmatpush1.msra.mxu0 0.0
    %698 = vmatprep.subr.mxu0 0.0
    %699 = vmatpush1.msra.mxu0 0.0
    %700 = vmatprep.subr.mxu0 0.0
    %701 = vmatpush1.msra.mxu0 0.0
    %702 = vmatprep.subr.mxu0 0.0
    %703 = vmatpush1.msra.mxu0 0.0
    %704 = vmatprep.subr.mxu0 0.0
    %705 = vmatpush1.msra.mxu0 0.0
    %706 = vmatprep.subr.mxu0 0.0
    %707 = vmatpush1.msra.mxu0 0.0
    %708 = vmatprep.subr.mxu0 0.0
    %709 = vmatpush1.msra.mxu0 0.0
    %710 = vmatprep.subr.mxu0 0.0
    %711 = vmatpush1.msra.mxu0 0.0
    %712 = vmatprep.subr.mxu0 0.0
    %713 = vmatpush1.msra.mxu0 0.0
    %714 = vmatprep.subr.mxu0 0.0
    %715 = vmatpush1.msra.mxu0 0.0
    %716 = vmatprep.subr.mxu0 0.0
    %717 = vmatpush1.msra.mxu0 0.0
    %718 = vmatprep.mubr.f32.mxu0 0.0
    %719 = vmatmul.mubr.f32.gmra.mrb[0].mxu0 %v646
    %v720 = vpop.f32.mrb[0].mxu0
    %v721 = vadd.f32 %v105, %v720
    %v722 = vpop.f32.mrb[0].mxu0
    %v723 = vadd.f32 %v109, %v722
    %724 = vdwg.mxu0
    %725 = vmatprep.subr.mxu0 %v39
    %726 = vmatpush1.msra.mxu0 %v38
    %727 = vmatprep.subr.mxu0 %v43
    %728 = vmatpush1.msra.mxu0 %v42
    %729 = vmatprep.subr.mxu0 %v47
    %730 = vmatpush1.msra.mxu0 %v46
    %731 = vmatprep.subr.mxu0 %v51
    %732 = vmatpush1.msra.mxu0 %v50
    %733 = vmatprep.subr.mxu0 %v55
    %734 = vmatpush1.msra.mxu0 %v54
    %735 = vmatprep.subr.mxu0 %v59
    %736 = vmatpush1.msra.mxu0 %v58
    %737 = vmatprep.subr.mxu0 %v63
    %738 = vmatpush1.msra.mxu0 %v62
    %739 = vmatprep.subr.mxu0 %v67
    %740 = vmatpush1.msra.mxu0 %v66
    %741 = vmatprep.subr.mxu0 %v71
    %742 = vmatpush1.msra.mxu0 %v70
    %743 = vmatprep.subr.mxu0 %v75
    %744 = vmatpush1.msra.mxu0 %v74
    %745 = vmatprep.subr.mxu0 %v79
    %746 = vmatpush1.msra.mxu0 %v78
    %747 = vmatprep.subr.mxu0 %v83
    %748 = vmatpush1.msra.mxu0 %v82
    %749 = vmatprep.subr.mxu0 %v87
    %750 = vmatpush1.msra.mxu0 %v86
    %751 = vmatprep.subr.mxu0 %v91
    %752 = vmatpush1.msra.mxu0 %v90
    %753 = vmatprep.subr.mxu0 %v95
    %754 = vmatpush1.msra.mxu0 %v94
    %755 = vmatprep.subr.mxu0 %v99
    %756 = vmatpush1.msra.mxu0 %v98
    %757 = vmatprep.subr.mxu0 0.0
    %758 = vmatpush1.msra.mxu0 0.0
    %759 = vmatprep.subr.mxu0 0.0
    %760 = vmatpush1.msra.mxu0 0.0
    %761 = vmatprep.subr.mxu0 0.0
    %762 = vmatpush1.msra.mxu0 0.0
    %763 = vmatprep.subr.mxu0 0.0
    %764 = vmatpush1.msra.mxu0 0.0
    %765 = vmatprep.subr.mxu0 0.0
    %766 = vmatpush1.msra.mxu0 0.0
    %767 = vmatprep.subr.mxu0 0.0
    %768 = vmatpush1.msra.mxu0 0.0
    %769 = vmatprep.subr.mxu0 0.0
    %770 = vmatpush1.msra.mxu0 0.0
    %771 = vmatprep.subr.mxu0 0.0
    %772 = vmatpush1.msra.mxu0 0.0
    %773 = vmatprep.subr.mxu0 0.0
    %774 = vmatpush1.msra.mxu0 0.0
    %775 = vmatprep.subr.mxu0 0.0
    %776 = vmatpush1.msra.mxu0 0.0
    %777 = vmatprep.subr.mxu0 0.0
    %778 = vmatpush1.msra.mxu0 0.0
    %779 = vmatprep.subr.mxu0 0.0
    %780 = vmatpush1.msra.mxu0 0.0
    %781 = vmatprep.subr.mxu0 0.0
    %782 = vmatpush1.msra.mxu0 0.0
    %783 = vmatprep.subr.mxu0 0.0
    %784 = vmatpush1.msra.mxu0 0.0
    %785 = vmatprep.subr.mxu0 0.0
    %786 = vmatpush1.msra.mxu0 0.0
    %787 = vmatprep.subr.mxu0 0.0
    %788 = vmatpush1.msra.mxu0 0.0
    %789 = vmatprep.mubr.f32.mxu0 0.0
    %790 = vmatmul.mubr.f32.gmra.mrb[0].mxu0 %v646
    %v791 = vpop.f32.mrb[0].mxu0
    %v792 = vadd.f32 %v113, %v791
    %v793 = vpop.f32.mrb[0].mxu0
    %v794 = vadd.f32 %v117, %v793
    %795 = vdwg.mxu0
    %v796 = vxor.u32 %v721, 2147483648
    %v797 = vxor.u32 %v723, 2147483648
    %v798 = vxor.u32 %v792, 2147483648
    %v799 = vmul.f32 %v796, 1.442695
    %v800 = vpow.pop %v799
    %v801 = vmul.f32 %v797, 1.442695
    %v802 = vpow.pop %v801
    %v803 = vmul.f32 %v798, 1.442695
    %v804 = vpow.pop %v803
    %v805 = vadd.f32 %v800, 1.0
    %v806 = vadd.f32 %v802, 1.0
    %v807 = vadd.f32 %v804, 1.0
    %v808 = vrcp.pop %v805
    %v809 = vmul.f32 1.0, %v808
    %v810 = vrcp.pop %v806
    %v811 = vmul.f32 1.0, %v810
    %v812 = vrcp.pop %v807
    %v813 = vmul.f32 1.0, %v812
    %v814 = vtanh.pop %v794
    %v815 = vmul.f32 %v811, %v644
    %v816 = vmul.f32 %v809, %v814
    %v817 = vadd.f32 %v815, %v816
    %v818 = vtanh.pop %v817
    %v819 = vmul.f32 %v813, %v818
    %v820 = vmul.f32 %v819, %v127
    %v821 = vsel %vm300, %v820, 0.0
    %822 = vadd.xlane.f32.xlu0 %v821
    %v823 = vpop.xlane.xlu0 %822
    %v824 = vadd.f32 %v823, %v304
    %vm825 = vcmp.eq.s32.totalorder %v131, 3
    %v826 = vsel %vm825, %v824, %v653
    %827 = vmatprep.subr.mxu0 %v37
    %828 = vmatpush1.msra.mxu0 %v36
    %829 = vmatprep.subr.mxu0 %v41
    %830 = vmatpush1.msra.mxu0 %v40
    %831 = vmatprep.subr.mxu0 %v45
    %832 = vmatpush1.msra.mxu0 %v44
    %833 = vmatprep.subr.mxu0 %v49
    %834 = vmatpush1.msra.mxu0 %v48
    %835 = vmatprep.subr.mxu0 %v53
    %836 = vmatpush1.msra.mxu0 %v52
    %837 = vmatprep.subr.mxu0 %v57
    %838 = vmatpush1.msra.mxu0 %v56
    %839 = vmatprep.subr.mxu0 %v61
    %840 = vmatpush1.msra.mxu0 %v60
    %841 = vmatprep.subr.mxu0 %v65
    %842 = vmatpush1.msra.mxu0 %v64
    %843 = vmatprep.subr.mxu0 %v69
    %844 = vmatpush1.msra.mxu0 %v68
    %845 = vmatprep.subr.mxu0 %v73
    %846 = vmatpush1.msra.mxu0 %v72
    %847 = vmatprep.subr.mxu0 %v77
    %848 = vmatpush1.msra.mxu0 %v76
    %849 = vmatprep.subr.mxu0 %v81
    %850 = vmatpush1.msra.mxu0 %v80
    %851 = vmatprep.subr.mxu0 %v85
    %852 = vmatpush1.msra.mxu0 %v84
    %853 = vmatprep.subr.mxu0 %v89
    %854 = vmatpush1.msra.mxu0 %v88
    %855 = vmatprep.subr.mxu0 %v93
    %856 = vmatpush1.msra.mxu0 %v92
    %857 = vmatprep.subr.mxu0 %v97
    %858 = vmatpush1.msra.mxu0 %v96
    %859 = vmatprep.subr.mxu0 0.0
    %860 = vmatpush1.msra.mxu0 0.0
    %861 = vmatprep.subr.mxu0 0.0
    %862 = vmatpush1.msra.mxu0 0.0
    %863 = vmatprep.subr.mxu0 0.0
    %864 = vmatpush1.msra.mxu0 0.0
    %865 = vmatprep.subr.mxu0 0.0
    %866 = vmatpush1.msra.mxu0 0.0
    %867 = vmatprep.subr.mxu0 0.0
    %868 = vmatpush1.msra.mxu0 0.0
    %869 = vmatprep.subr.mxu0 0.0
    %870 = vmatpush1.msra.mxu0 0.0
    %871 = vmatprep.subr.mxu0 0.0
    %872 = vmatpush1.msra.mxu0 0.0
    %873 = vmatprep.subr.mxu0 0.0
    %874 = vmatpush1.msra.mxu0 0.0
    %875 = vmatprep.subr.mxu0 0.0
    %876 = vmatpush1.msra.mxu0 0.0
    %877 = vmatprep.subr.mxu0 0.0
    %878 = vmatpush1.msra.mxu0 0.0
    %879 = vmatprep.subr.mxu0 0.0
    %880 = vmatpush1.msra.mxu0 0.0
    %881 = vmatprep.subr.mxu0 0.0
    %882 = vmatpush1.msra.mxu0 0.0
    %883 = vmatprep.subr.mxu0 0.0
    %884 = vmatpush1.msra.mxu0 0.0
    %885 = vmatprep.subr.mxu0 0.0
    %886 = vmatpush1.msra.mxu0 0.0
    %887 = vmatprep.subr.mxu0 0.0
    %888 = vmatpush1.msra.mxu0 0.0
    %889 = vmatprep.subr.mxu0 0.0
    %890 = vmatpush1.msra.mxu0 0.0
    %891 = vmatprep.mubr.f32.mxu0 0.0
    %892 = vmatmul.mubr.f32.gmra.mrb[0].mxu0 %v819
    %v893 = vpop.f32.mrb[0].mxu0
    %v894 = vadd.f32 %v105, %v893
    %v895 = vpop.f32.mrb[0].mxu0
    %v896 = vadd.f32 %v109, %v895
    %897 = vdwg.mxu0
    %898 = vmatprep.subr.mxu0 %v39
    %899 = vmatpush1.msra.mxu0 %v38
    %900 = vmatprep.subr.mxu0 %v43
    %901 = vmatpush1.msra.mxu0 %v42
    %902 = vmatprep.subr.mxu0 %v47
    %903 = vmatpush1.msra.mxu0 %v46
    %904 = vmatprep.subr.mxu0 %v51
    %905 = vmatpush1.msra.mxu0 %v50
    %906 = vmatprep.subr.mxu0 %v55
    %907 = vmatpush1.msra.mxu0 %v54
    %908 = vmatprep.subr.mxu0 %v59
    %909 = vmatpush1.msra.mxu0 %v58
    %910 = vmatprep.subr.mxu0 %v63
    %911 = vmatpush1.msra.mxu0 %v62
    %912 = vmatprep.subr.mxu0 %v67
    %913 = vmatpush1.msra.mxu0 %v66
    %914 = vmatprep.subr.mxu0 %v71
    %915 = vmatpush1.msra.mxu0 %v70
    %916 = vmatprep.subr.mxu0 %v75
    %917 = vmatpush1.msra.mxu0 %v74
    %918 = vmatprep.subr.mxu0 %v79
    %919 = vmatpush1.msra.mxu0 %v78
    %920 = vmatprep.subr.mxu0 %v83
    %921 = vmatpush1.msra.mxu0 %v82
    %922 = vmatprep.subr.mxu0 %v87
    %923 = vmatpush1.msra.mxu0 %v86
    %924 = vmatprep.subr.mxu0 %v91
    %925 = vmatpush1.msra.mxu0 %v90
    %926 = vmatprep.subr.mxu0 %v95
    %927 = vmatpush1.msra.mxu0 %v94
    %928 = vmatprep.subr.mxu0 %v99
    %929 = vmatpush1.msra.mxu0 %v98
    %930 = vmatprep.subr.mxu0 0.0
    %931 = vmatpush1.msra.mxu0 0.0
    %932 = vmatprep.subr.mxu0 0.0
    %933 = vmatpush1.msra.mxu0 0.0
    %934 = vmatprep.subr.mxu0 0.0
    %935 = vmatpush1.msra.mxu0 0.0
    %936 = vmatprep.subr.mxu0 0.0
    %937 = vmatpush1.msra.mxu0 0.0
    %938 = vmatprep.subr.mxu0 0.0
    %939 = vmatpush1.msra.mxu0 0.0
    %940 = vmatprep.subr.mxu0 0.0
    %941 = vmatpush1.msra.mxu0 0.0
    %942 = vmatprep.subr.mxu0 0.0
    %943 = vmatpush1.msra.mxu0 0.0
    %944 = vmatprep.subr.mxu0 0.0
    %945 = vmatpush1.msra.mxu0 0.0
    %946 = vmatprep.subr.mxu0 0.0
    %947 = vmatpush1.msra.mxu0 0.0
    %948 = vmatprep.subr.mxu0 0.0
    %949 = vmatpush1.msra.mxu0 0.0
    %950 = vmatprep.subr.mxu0 0.0
    %951 = vmatpush1.msra.mxu0 0.0
    %952 = vmatprep.subr.mxu0 0.0
    %953 = vmatpush1.msra.mxu0 0.0
    %954 = vmatprep.subr.mxu0 0.0
    %955 = vmatpush1.msra.mxu0 0.0
    %956 = vmatprep.subr.mxu0 0.0
    %957 = vmatpush1.msra.mxu0 0.0
    %958 = vmatprep.subr.mxu0 0.0
    %959 = vmatpush1.msra.mxu0 0.0
    %960 = vmatprep.subr.mxu0 0.0
    %961 = vmatpush1.msra.mxu0 0.0
    %962 = vmatprep.mubr.f32.mxu0 0.0
    %963 = vmatmul.mubr.f32.gmra.mrb[0].mxu0 %v819
    %v964 = vpop.f32.mrb[0].mxu0
    %v965 = vadd.f32 %v113, %v964
    %v966 = vpop.f32.mrb[0].mxu0
    %v967 = vadd.f32 %v117, %v966
    %968 = vdwg.mxu0
    %v969 = vxor.u32 %v894, 2147483648
    %v970 = vxor.u32 %v896, 2147483648
    %v971 = vxor.u32 %v965, 2147483648
    %v972 = vmul.f32 %v969, 1.442695
    %v973 = vpow.pop %v972
    %v974 = vmul.f32 %v970, 1.442695
    %v975 = vpow.pop %v974
    %v976 = vmul.f32 %v971, 1.442695
    %v977 = vpow.pop %v976
    %v978 = vadd.f32 %v973, 1.0
    %v979 = vadd.f32 %v975, 1.0
    %v980 = vadd.f32 %v977, 1.0
    %v981 = vrcp.pop %v978
    %v982 = vmul.f32 1.0, %v981
    %v983 = vrcp.pop %v979
    %v984 = vmul.f32 1.0, %v983
    %v985 = vrcp.pop %v980
    %v986 = vmul.f32 1.0, %v985
    %v987 = vtanh.pop %v967
    %v988 = vmul.f32 %v984, %v817
    %v989 = vmul.f32 %v982, %v987
    %v990 = vadd.f32 %v988, %v989
    %v991 = vtanh.pop %v990
    %v992 = vmul.f32 %v986, %v991
    %v993 = vmul.f32 %v992, %v127
    %v994 = vsel %vm300, %v993, 0.0
    %995 = vadd.xlane.f32.xlu0 %v994
    %v996 = vpop.xlane.xlu0 %995
    %v997 = vadd.f32 %v996, %v304
    %vm998 = vcmp.eq.s32.totalorder %v131, 4
    %v999 = vsel %vm998, %v997, %v826
    %1000 = vmatprep.subr.mxu0 %v37
    %1001 = vmatpush1.msra.mxu0 %v36
    %1002 = vmatprep.subr.mxu0 %v41
    %1003 = vmatpush1.msra.mxu0 %v40
    %1004 = vmatprep.subr.mxu0 %v45
    %1005 = vmatpush1.msra.mxu0 %v44
    %1006 = vmatprep.subr.mxu0 %v49
    %1007 = vmatpush1.msra.mxu0 %v48
    %1008 = vmatprep.subr.mxu0 %v53
    %1009 = vmatpush1.msra.mxu0 %v52
    %1010 = vmatprep.subr.mxu0 %v57
    %1011 = vmatpush1.msra.mxu0 %v56
    %1012 = vmatprep.subr.mxu0 %v61
    %1013 = vmatpush1.msra.mxu0 %v60
    %1014 = vmatprep.subr.mxu0 %v65
    %1015 = vmatpush1.msra.mxu0 %v64
    %1016 = vmatprep.subr.mxu0 %v69
    %1017 = vmatpush1.msra.mxu0 %v68
    %1018 = vmatprep.subr.mxu0 %v73
    %1019 = vmatpush1.msra.mxu0 %v72
    %1020 = vmatprep.subr.mxu0 %v77
    %1021 = vmatpush1.msra.mxu0 %v76
    %1022 = vmatprep.subr.mxu0 %v81
    %1023 = vmatpush1.msra.mxu0 %v80
    %1024 = vmatprep.subr.mxu0 %v85
    %1025 = vmatpush1.msra.mxu0 %v84
    %1026 = vmatprep.subr.mxu0 %v89
    %1027 = vmatpush1.msra.mxu0 %v88
    %1028 = vmatprep.subr.mxu0 %v93
    %1029 = vmatpush1.msra.mxu0 %v92
    %1030 = vmatprep.subr.mxu0 %v97
    %1031 = vmatpush1.msra.mxu0 %v96
    %1032 = vmatprep.subr.mxu0 0.0
    %1033 = vmatpush1.msra.mxu0 0.0
    %1034 = vmatprep.subr.mxu0 0.0
    %1035 = vmatpush1.msra.mxu0 0.0
    %1036 = vmatprep.subr.mxu0 0.0
    %1037 = vmatpush1.msra.mxu0 0.0
    %1038 = vmatprep.subr.mxu0 0.0
    %1039 = vmatpush1.msra.mxu0 0.0
    %1040 = vmatprep.subr.mxu0 0.0
    %1041 = vmatpush1.msra.mxu0 0.0
    %1042 = vmatprep.subr.mxu0 0.0
    %1043 = vmatpush1.msra.mxu0 0.0
    %1044 = vmatprep.subr.mxu0 0.0
    %1045 = vmatpush1.msra.mxu0 0.0
    %1046 = vmatprep.subr.mxu0 0.0
    %1047 = vmatpush1.msra.mxu0 0.0
    %1048 = vmatprep.subr.mxu0 0.0
    %1049 = vmatpush1.msra.mxu0 0.0
    %1050 = vmatprep.subr.mxu0 0.0
    %1051 = vmatpush1.msra.mxu0 0.0
    %1052 = vmatprep.subr.mxu0 0.0
    %1053 = vmatpush1.msra.mxu0 0.0
    %1054 = vmatprep.subr.mxu0 0.0
    %1055 = vmatpush1.msra.mxu0 0.0
    %1056 = vmatprep.subr.mxu0 0.0
    %1057 = vmatpush1.msra.mxu0 0.0
    %1058 = vmatprep.subr.mxu0 0.0
    %1059 = vmatpush1.msra.mxu0 0.0
    %1060 = vmatprep.subr.mxu0 0.0
    %1061 = vmatpush1.msra.mxu0 0.0
    %1062 = vmatprep.subr.mxu0 0.0
    %1063 = vmatpush1.msra.mxu0 0.0
    %1064 = vmatprep.mubr.f32.mxu0 0.0
    %1065 = vmatmul.mubr.f32.gmra.mrb[0].mxu0 %v992
    %v1066 = vpop.f32.mrb[0].mxu0
    %v1067 = vadd.f32 %v105, %v1066
    %v1068 = vpop.f32.mrb[0].mxu0
    %v1069 = vadd.f32 %v109, %v1068
    %1070 = vdwg.mxu0
    %1071 = vmatprep.subr.mxu0 %v39
    %1072 = vmatpush1.msra.mxu0 %v38
    %1073 = vmatprep.subr.mxu0 %v43
    %1074 = vmatpush1.msra.mxu0 %v42
    %1075 = vmatprep.subr.mxu0 %v47
    %1076 = vmatpush1.msra.mxu0 %v46
    %1077 = vmatprep.subr.mxu0 %v51
    %1078 = vmatpush1.msra.mxu0 %v50
    %1079 = vmatprep.subr.mxu0 %v55
    %1080 = vmatpush1.msra.mxu0 %v54
    %1081 = vmatprep.subr.mxu0 %v59
    %1082 = vmatpush1.msra.mxu0 %v58
    %1083 = vmatprep.subr.mxu0 %v63
    %1084 = vmatpush1.msra.mxu0 %v62
    %1085 = vmatprep.subr.mxu0 %v67
    %1086 = vmatpush1.msra.mxu0 %v66
    %1087 = vmatprep.subr.mxu0 %v71
    %1088 = vmatpush1.msra.mxu0 %v70
    %1089 = vmatprep.subr.mxu0 %v75
    %1090 = vmatpush1.msra.mxu0 %v74
    %1091 = vmatprep.subr.mxu0 %v79
    %1092 = vmatpush1.msra.mxu0 %v78
    %1093 = vmatprep.subr.mxu0 %v83
    %1094 = vmatpush1.msra.mxu0 %v82
    %1095 = vmatprep.subr.mxu0 %v87
    %1096 = vmatpush1.msra.mxu0 %v86
    %1097 = vmatprep.subr.mxu0 %v91
    %1098 = vmatpush1.msra.mxu0 %v90
    %1099 = vmatprep.subr.mxu0 %v95
    %1100 = vmatpush1.msra.mxu0 %v94
    %1101 = vmatprep.subr.mxu0 %v99
    %1102 = vmatpush1.msra.mxu0 %v98
    %1103 = vmatprep.subr.mxu0 0.0
    %1104 = vmatpush1.msra.mxu0 0.0
    %1105 = vmatprep.subr.mxu0 0.0
    %1106 = vmatpush1.msra.mxu0 0.0
    %1107 = vmatprep.subr.mxu0 0.0
    %1108 = vmatpush1.msra.mxu0 0.0
    %1109 = vmatprep.subr.mxu0 0.0
    %1110 = vmatpush1.msra.mxu0 0.0
    %1111 = vmatprep.subr.mxu0 0.0
    %1112 = vmatpush1.msra.mxu0 0.0
    %1113 = vmatprep.subr.mxu0 0.0
    %1114 = vmatpush1.msra.mxu0 0.0
    %1115 = vmatprep.subr.mxu0 0.0
    %1116 = vmatpush1.msra.mxu0 0.0
    %1117 = vmatprep.subr.mxu0 0.0
    %1118 = vmatpush1.msra.mxu0 0.0
    %1119 = vmatprep.subr.mxu0 0.0
    %1120 = vmatpush1.msra.mxu0 0.0
    %1121 = vmatprep.subr.mxu0 0.0
    %1122 = vmatpush1.msra.mxu0 0.0
    %1123 = vmatprep.subr.mxu0 0.0
    %1124 = vmatpush1.msra.mxu0 0.0
    %1125 = vmatprep.subr.mxu0 0.0
    %1126 = vmatpush1.msra.mxu0 0.0
    %1127 = vmatprep.subr.mxu0 0.0
    %1128 = vmatpush1.msra.mxu0 0.0
    %1129 = vmatprep.subr.mxu0 0.0
    %1130 = vmatpush1.msra.mxu0 0.0
    %1131 = vmatprep.subr.mxu0 0.0
    %1132 = vmatpush1.msra.mxu0 0.0
    %1133 = vmatprep.subr.mxu0 0.0
    %1134 = vmatpush1.msra.mxu0 0.0
    %1135 = vmatprep.mubr.f32.mxu0 0.0
    %1136 = vmatmul.mubr.f32.gmra.mrb[0].mxu0 %v992
    %v1137 = vpop.f32.mrb[0].mxu0
    %v1138 = vadd.f32 %v113, %v1137
    %v1139 = vpop.f32.mrb[0].mxu0
    %v1140 = vadd.f32 %v117, %v1139
    %1141 = vdwg.mxu0
    %v1142 = vxor.u32 %v1067, 2147483648
    %v1143 = vxor.u32 %v1069, 2147483648
    %v1144 = vxor.u32 %v1138, 2147483648
    %v1145 = vmul.f32 %v1142, 1.442695
    %v1146 = vpow.pop %v1145
    %v1147 = vmul.f32 %v1143, 1.442695
    %v1148 = vpow.pop %v1147
    %v1149 = vmul.f32 %v1144, 1.442695
    %v1150 = vpow.pop %v1149
    %v1151 = vadd.f32 %v1146, 1.0
    %v1152 = vadd.f32 %v1148, 1.0
    %v1153 = vadd.f32 %v1150, 1.0
    %v1154 = vrcp.pop %v1151
    %v1155 = vmul.f32 1.0, %v1154
    %v1156 = vrcp.pop %v1152
    %v1157 = vmul.f32 1.0, %v1156
    %v1158 = vrcp.pop %v1153
    %v1159 = vmul.f32 1.0, %v1158
    %v1160 = vtanh.pop %v1140
    %v1161 = vmul.f32 %v1157, %v990
    %v1162 = vmul.f32 %v1155, %v1160
    %v1163 = vadd.f32 %v1161, %v1162
    %v1164 = vtanh.pop %v1163
    %v1165 = vmul.f32 %v1159, %v1164
    %v1166 = vmul.f32 %v1165, %v127
    %v1167 = vsel %vm300, %v1166, 0.0
    %1168 = vadd.xlane.f32.xlu0 %v1167
    %v1169 = vpop.xlane.xlu0 %1168
    %v1170 = vadd.f32 %v1169, %v304
    %vm1171 = vcmp.eq.s32.totalorder %v131, 5
    %v1172 = vsel %vm1171, %v1170, %v999
    %1173 = vmatprep.subr.mxu0 %v37
    %1174 = vmatpush1.msra.mxu0 %v36
    %1175 = vmatprep.subr.mxu0 %v41
    %1176 = vmatpush1.msra.mxu0 %v40
    %1177 = vmatprep.subr.mxu0 %v45
    %1178 = vmatpush1.msra.mxu0 %v44
    %1179 = vmatprep.subr.mxu0 %v49
    %1180 = vmatpush1.msra.mxu0 %v48
    %1181 = vmatprep.subr.mxu0 %v53
    %1182 = vmatpush1.msra.mxu0 %v52
    %1183 = vmatprep.subr.mxu0 %v57
    %1184 = vmatpush1.msra.mxu0 %v56
    %1185 = vmatprep.subr.mxu0 %v61
    %1186 = vmatpush1.msra.mxu0 %v60
    %1187 = vmatprep.subr.mxu0 %v65
    %1188 = vmatpush1.msra.mxu0 %v64
    %1189 = vmatprep.subr.mxu0 %v69
    %1190 = vmatpush1.msra.mxu0 %v68
    %1191 = vmatprep.subr.mxu0 %v73
    %1192 = vmatpush1.msra.mxu0 %v72
    %1193 = vmatprep.subr.mxu0 %v77
    %1194 = vmatpush1.msra.mxu0 %v76
    %1195 = vmatprep.subr.mxu0 %v81
    %1196 = vmatpush1.msra.mxu0 %v80
    %1197 = vmatprep.subr.mxu0 %v85
    %1198 = vmatpush1.msra.mxu0 %v84
    %1199 = vmatprep.subr.mxu0 %v89
    %1200 = vmatpush1.msra.mxu0 %v88
    %1201 = vmatprep.subr.mxu0 %v93
    %1202 = vmatpush1.msra.mxu0 %v92
    %1203 = vmatprep.subr.mxu0 %v97
    %1204 = vmatpush1.msra.mxu0 %v96
    %1205 = vmatprep.subr.mxu0 0.0
    %1206 = vmatpush1.msra.mxu0 0.0
    %1207 = vmatprep.subr.mxu0 0.0
    %1208 = vmatpush1.msra.mxu0 0.0
    %1209 = vmatprep.subr.mxu0 0.0
    %1210 = vmatpush1.msra.mxu0 0.0
    %1211 = vmatprep.subr.mxu0 0.0
    %1212 = vmatpush1.msra.mxu0 0.0
    %1213 = vmatprep.subr.mxu0 0.0
    %1214 = vmatpush1.msra.mxu0 0.0
    %1215 = vmatprep.subr.mxu0 0.0
    %1216 = vmatpush1.msra.mxu0 0.0
    %1217 = vmatprep.subr.mxu0 0.0
    %1218 = vmatpush1.msra.mxu0 0.0
    %1219 = vmatprep.subr.mxu0 0.0
    %1220 = vmatpush1.msra.mxu0 0.0
    %1221 = vmatprep.subr.mxu0 0.0
    %1222 = vmatpush1.msra.mxu0 0.0
    %1223 = vmatprep.subr.mxu0 0.0
    %1224 = vmatpush1.msra.mxu0 0.0
    %1225 = vmatprep.subr.mxu0 0.0
    %1226 = vmatpush1.msra.mxu0 0.0
    %1227 = vmatprep.subr.mxu0 0.0
    %1228 = vmatpush1.msra.mxu0 0.0
    %1229 = vmatprep.subr.mxu0 0.0
    %1230 = vmatpush1.msra.mxu0 0.0
    %1231 = vmatprep.subr.mxu0 0.0
    %1232 = vmatpush1.msra.mxu0 0.0
    %1233 = vmatprep.subr.mxu0 0.0
    %1234 = vmatpush1.msra.mxu0 0.0
    %1235 = vmatprep.subr.mxu0 0.0
    %1236 = vmatpush1.msra.mxu0 0.0
    %1237 = vmatprep.mubr.f32.mxu0 0.0
    %1238 = vmatmul.mubr.f32.gmra.mrb[0].mxu0 %v1165
    %v1239 = vpop.f32.mrb[0].mxu0
    %v1240 = vadd.f32 %v105, %v1239
    %v1241 = vpop.f32.mrb[0].mxu0
    %v1242 = vadd.f32 %v109, %v1241
    %1243 = vdwg.mxu0
    %1244 = vmatprep.subr.mxu0 %v39
    %1245 = vmatpush1.msra.mxu0 %v38
    %1246 = vmatprep.subr.mxu0 %v43
    %1247 = vmatpush1.msra.mxu0 %v42
    %1248 = vmatprep.subr.mxu0 %v47
    %1249 = vmatpush1.msra.mxu0 %v46
    %1250 = vmatprep.subr.mxu0 %v51
    %1251 = vmatpush1.msra.mxu0 %v50
    %1252 = vmatprep.subr.mxu0 %v55
    %1253 = vmatpush1.msra.mxu0 %v54
    %1254 = vmatprep.subr.mxu0 %v59
    %1255 = vmatpush1.msra.mxu0 %v58
    %1256 = vmatprep.subr.mxu0 %v63
    %1257 = vmatpush1.msra.mxu0 %v62
    %1258 = vmatprep.subr.mxu0 %v67
    %1259 = vmatpush1.msra.mxu0 %v66
    %1260 = vmatprep.subr.mxu0 %v71
    %1261 = vmatpush1.msra.mxu0 %v70
    %1262 = vmatprep.subr.mxu0 %v75
    %1263 = vmatpush1.msra.mxu0 %v74
    %1264 = vmatprep.subr.mxu0 %v79
    %1265 = vmatpush1.msra.mxu0 %v78
    %1266 = vmatprep.subr.mxu0 %v83
    %1267 = vmatpush1.msra.mxu0 %v82
    %1268 = vmatprep.subr.mxu0 %v87
    %1269 = vmatpush1.msra.mxu0 %v86
    %1270 = vmatprep.subr.mxu0 %v91
    %1271 = vmatpush1.msra.mxu0 %v90
    %1272 = vmatprep.subr.mxu0 %v95
    %1273 = vmatpush1.msra.mxu0 %v94
    %1274 = vmatprep.subr.mxu0 %v99
    %1275 = vmatpush1.msra.mxu0 %v98
    %1276 = vmatprep.subr.mxu0 0.0
    %1277 = vmatpush1.msra.mxu0 0.0
    %1278 = vmatprep.subr.mxu0 0.0
    %1279 = vmatpush1.msra.mxu0 0.0
    %1280 = vmatprep.subr.mxu0 0.0
    %1281 = vmatpush1.msra.mxu0 0.0
    %1282 = vmatprep.subr.mxu0 0.0
    %1283 = vmatpush1.msra.mxu0 0.0
    %1284 = vmatprep.subr.mxu0 0.0
    %1285 = vmatpush1.msra.mxu0 0.0
    %1286 = vmatprep.subr.mxu0 0.0
    %1287 = vmatpush1.msra.mxu0 0.0
    %1288 = vmatprep.subr.mxu0 0.0
    %1289 = vmatpush1.msra.mxu0 0.0
    %1290 = vmatprep.subr.mxu0 0.0
    %1291 = vmatpush1.msra.mxu0 0.0
    %1292 = vmatprep.subr.mxu0 0.0
    %1293 = vmatpush1.msra.mxu0 0.0
    %1294 = vmatprep.subr.mxu0 0.0
    %1295 = vmatpush1.msra.mxu0 0.0
    %1296 = vmatprep.subr.mxu0 0.0
    %1297 = vmatpush1.msra.mxu0 0.0
    %1298 = vmatprep.subr.mxu0 0.0
    %1299 = vmatpush1.msra.mxu0 0.0
    %1300 = vmatprep.subr.mxu0 0.0
    %1301 = vmatpush1.msra.mxu0 0.0
    %1302 = vmatprep.subr.mxu0 0.0
    %1303 = vmatpush1.msra.mxu0 0.0
    %1304 = vmatprep.subr.mxu0 0.0
    %1305 = vmatpush1.msra.mxu0 0.0
    %1306 = vmatprep.subr.mxu0 0.0
    %1307 = vmatpush1.msra.mxu0 0.0
    %1308 = vmatprep.mubr.f32.mxu0 0.0
    %1309 = vmatmul.mubr.f32.gmra.mrb[0].mxu0 %v1165
    %v1310 = vpop.f32.mrb[0].mxu0
    %v1311 = vadd.f32 %v113, %v1310
    %v1312 = vpop.f32.mrb[0].mxu0
    %v1313 = vadd.f32 %v117, %v1312
    %1314 = vdwg.mxu0
    %v1315 = vxor.u32 %v1240, 2147483648
    %v1316 = vxor.u32 %v1242, 2147483648
    %v1317 = vxor.u32 %v1311, 2147483648
    %v1318 = vmul.f32 %v1315, 1.442695
    %v1319 = vpow.pop %v1318
    %v1320 = vmul.f32 %v1316, 1.442695
    %v1321 = vpow.pop %v1320
    %v1322 = vmul.f32 %v1317, 1.442695
    %v1323 = vpow.pop %v1322
    %v1324 = vadd.f32 %v1319, 1.0
    %v1325 = vadd.f32 %v1321, 1.0
    %v1326 = vadd.f32 %v1323, 1.0
    %v1327 = vrcp.pop %v1324
    %v1328 = vmul.f32 1.0, %v1327
    %v1329 = vrcp.pop %v1325
    %v1330 = vmul.f32 1.0, %v1329
    %v1331 = vrcp.pop %v1326
    %v1332 = vmul.f32 1.0, %v1331
    %v1333 = vtanh.pop %v1313
    %v1334 = vmul.f32 %v1330, %v1163
    %v1335 = vmul.f32 %v1328, %v1333
    %v1336 = vadd.f32 %v1334, %v1335
    %v1337 = vtanh.pop %v1336
    %v1338 = vmul.f32 %v1332, %v1337
    %v1339 = vmul.f32 %v1338, %v127
    %v1340 = vsel %vm300, %v1339, 0.0
    %1341 = vadd.xlane.f32.xlu0 %v1340
    %v1342 = vpop.xlane.xlu0 %1341
    %v1343 = vadd.f32 %v1342, %v304
    %vm1344 = vcmp.eq.s32.totalorder %v131, 6
    %v1345 = vsel %vm1344, %v1343, %v1172
    %1346 = vmatprep.subr.mxu0 %v37
    %1347 = vmatpush1.msra.mxu0 %v36
    %1348 = vmatprep.subr.mxu0 %v41
    %1349 = vmatpush1.msra.mxu0 %v40
    %1350 = vmatprep.subr.mxu0 %v45
    %1351 = vmatpush1.msra.mxu0 %v44
    %1352 = vmatprep.subr.mxu0 %v49
    %1353 = vmatpush1.msra.mxu0 %v48
    %1354 = vmatprep.subr.mxu0 %v53
    %1355 = vmatpush1.msra.mxu0 %v52
    %1356 = vmatprep.subr.mxu0 %v57
    %1357 = vmatpush1.msra.mxu0 %v56
    %1358 = vmatprep.subr.mxu0 %v61
    %1359 = vmatpush1.msra.mxu0 %v60
    %1360 = vmatprep.subr.mxu0 %v65
    %1361 = vmatpush1.msra.mxu0 %v64
    %1362 = vmatprep.subr.mxu0 %v69
    %1363 = vmatpush1.msra.mxu0 %v68
    %1364 = vmatprep.subr.mxu0 %v73
    %1365 = vmatpush1.msra.mxu0 %v72
    %1366 = vmatprep.subr.mxu0 %v77
    %1367 = vmatpush1.msra.mxu0 %v76
    %1368 = vmatprep.subr.mxu0 %v81
    %1369 = vmatpush1.msra.mxu0 %v80
    %1370 = vmatprep.subr.mxu0 %v85
    %1371 = vmatpush1.msra.mxu0 %v84
    %1372 = vmatprep.subr.mxu0 %v89
    %1373 = vmatpush1.msra.mxu0 %v88
    %1374 = vmatprep.subr.mxu0 %v93
    %1375 = vmatpush1.msra.mxu0 %v92
    %1376 = vmatprep.subr.mxu0 %v97
    %1377 = vmatpush1.msra.mxu0 %v96
    %1378 = vmatprep.subr.mxu0 0.0
    %1379 = vmatpush1.msra.mxu0 0.0
    %1380 = vmatprep.subr.mxu0 0.0
    %1381 = vmatpush1.msra.mxu0 0.0
    %1382 = vmatprep.subr.mxu0 0.0
    %1383 = vmatpush1.msra.mxu0 0.0
    %1384 = vmatprep.subr.mxu0 0.0
    %1385 = vmatpush1.msra.mxu0 0.0
    %1386 = vmatprep.subr.mxu0 0.0
    %1387 = vmatpush1.msra.mxu0 0.0
    %1388 = vmatprep.subr.mxu0 0.0
    %1389 = vmatpush1.msra.mxu0 0.0
    %1390 = vmatprep.subr.mxu0 0.0
    %1391 = vmatpush1.msra.mxu0 0.0
    %1392 = vmatprep.subr.mxu0 0.0
    %1393 = vmatpush1.msra.mxu0 0.0
    %1394 = vmatprep.subr.mxu0 0.0
    %1395 = vmatpush1.msra.mxu0 0.0
    %1396 = vmatprep.subr.mxu0 0.0
    %1397 = vmatpush1.msra.mxu0 0.0
    %1398 = vmatprep.subr.mxu0 0.0
    %1399 = vmatpush1.msra.mxu0 0.0
    %1400 = vmatprep.subr.mxu0 0.0
    %1401 = vmatpush1.msra.mxu0 0.0
    %1402 = vmatprep.subr.mxu0 0.0
    %1403 = vmatpush1.msra.mxu0 0.0
    %1404 = vmatprep.subr.mxu0 0.0
    %1405 = vmatpush1.msra.mxu0 0.0
    %1406 = vmatprep.subr.mxu0 0.0
    %1407 = vmatpush1.msra.mxu0 0.0
    %1408 = vmatprep.subr.mxu0 0.0
    %1409 = vmatpush1.msra.mxu0 0.0
    %1410 = vmatprep.mubr.f32.mxu0 0.0
    %1411 = vmatmul.mubr.f32.gmra.mrb[0].mxu0 %v1338
    %v1412 = vpop.f32.mrb[0].mxu0
    %v1413 = vadd.f32 %v105, %v1412
    %v1414 = vpop.f32.mrb[0].mxu0
    %v1415 = vadd.f32 %v109, %v1414
    %1416 = vdwg.mxu0
    %1417 = vmatprep.subr.mxu0 %v39
    %1418 = vmatpush1.msra.mxu0 %v38
    %1419 = vmatprep.subr.mxu0 %v43
    %1420 = vmatpush1.msra.mxu0 %v42
    %1421 = vmatprep.subr.mxu0 %v47
    %1422 = vmatpush1.msra.mxu0 %v46
    %1423 = vmatprep.subr.mxu0 %v51
    %1424 = vmatpush1.msra.mxu0 %v50
    %1425 = vmatprep.subr.mxu0 %v55
    %1426 = vmatpush1.msra.mxu0 %v54
    %1427 = vmatprep.subr.mxu0 %v59
    %1428 = vmatpush1.msra.mxu0 %v58
    %1429 = vmatprep.subr.mxu0 %v63
    %1430 = vmatpush1.msra.mxu0 %v62
    %1431 = vmatprep.subr.mxu0 %v67
    %1432 = vmatpush1.msra.mxu0 %v66
    %1433 = vmatprep.subr.mxu0 %v71
    %1434 = vmatpush1.msra.mxu0 %v70
    %1435 = vmatprep.subr.mxu0 %v75
    %1436 = vmatpush1.msra.mxu0 %v74
    %1437 = vmatprep.subr.mxu0 %v79
    %1438 = vmatpush1.msra.mxu0 %v78
    %1439 = vmatprep.subr.mxu0 %v83
    %1440 = vmatpush1.msra.mxu0 %v82
    %1441 = vmatprep.subr.mxu0 %v87
    %1442 = vmatpush1.msra.mxu0 %v86
    %1443 = vmatprep.subr.mxu0 %v91
    %1444 = vmatpush1.msra.mxu0 %v90
    %1445 = vmatprep.subr.mxu0 %v95
    %1446 = vmatpush1.msra.mxu0 %v94
    %1447 = vmatprep.subr.mxu0 %v99
    %1448 = vmatpush1.msra.mxu0 %v98
    %1449 = vmatprep.subr.mxu0 0.0
    %1450 = vmatpush1.msra.mxu0 0.0
    %1451 = vmatprep.subr.mxu0 0.0
    %1452 = vmatpush1.msra.mxu0 0.0
    %1453 = vmatprep.subr.mxu0 0.0
    %1454 = vmatpush1.msra.mxu0 0.0
    %1455 = vmatprep.subr.mxu0 0.0
    %1456 = vmatpush1.msra.mxu0 0.0
    %1457 = vmatprep.subr.mxu0 0.0
    %1458 = vmatpush1.msra.mxu0 0.0
    %1459 = vmatprep.subr.mxu0 0.0
    %1460 = vmatpush1.msra.mxu0 0.0
    %1461 = vmatprep.subr.mxu0 0.0
    %1462 = vmatpush1.msra.mxu0 0.0
    %1463 = vmatprep.subr.mxu0 0.0
    %1464 = vmatpush1.msra.mxu0 0.0
    %1465 = vmatprep.subr.mxu0 0.0
    %1466 = vmatpush1.msra.mxu0 0.0
    %1467 = vmatprep.subr.mxu0 0.0
    %1468 = vmatpush1.msra.mxu0 0.0
    %1469 = vmatprep.subr.mxu0 0.0
    %1470 = vmatpush1.msra.mxu0 0.0
    %1471 = vmatprep.subr.mxu0 0.0
    %1472 = vmatpush1.msra.mxu0 0.0
    %1473 = vmatprep.subr.mxu0 0.0
    %1474 = vmatpush1.msra.mxu0 0.0
    %1475 = vmatprep.subr.mxu0 0.0
    %1476 = vmatpush1.msra.mxu0 0.0
    %1477 = vmatprep.subr.mxu0 0.0
    %1478 = vmatpush1.msra.mxu0 0.0
    %1479 = vmatprep.subr.mxu0 0.0
    %1480 = vmatpush1.msra.mxu0 0.0
    %1481 = vmatprep.mubr.f32.mxu0 0.0
    %1482 = vmatmul.mubr.f32.gmra.mrb[0].mxu0 %v1338
    %v1483 = vpop.f32.mrb[0].mxu0
    %v1484 = vadd.f32 %v113, %v1483
    %v1485 = vpop.f32.mrb[0].mxu0
    %v1486 = vadd.f32 %v117, %v1485
    %1487 = vdwg.mxu0
    %v1488 = vxor.u32 %v1413, 2147483648
    %v1489 = vxor.u32 %v1415, 2147483648
    %v1490 = vxor.u32 %v1484, 2147483648
    %v1491 = vmul.f32 %v1488, 1.442695
    %v1492 = vpow.pop %v1491
    %v1493 = vmul.f32 %v1489, 1.442695
    %v1494 = vpow.pop %v1493
    %v1495 = vmul.f32 %v1490, 1.442695
    %v1496 = vpow.pop %v1495
    %v1497 = vadd.f32 %v1492, 1.0
    %v1498 = vadd.f32 %v1494, 1.0
    %v1499 = vadd.f32 %v1496, 1.0
    %v1500 = vrcp.pop %v1497
    %v1501 = vmul.f32 1.0, %v1500
    %v1502 = vrcp.pop %v1498
    %v1503 = vmul.f32 1.0, %v1502
    %v1504 = vrcp.pop %v1499
    %v1505 = vmul.f32 1.0, %v1504
    %v1506 = vtanh.pop %v1486
    %v1507 = vmul.f32 %v1503, %v1336
    %v1508 = vmul.f32 %v1501, %v1506
    %v1509 = vadd.f32 %v1507, %v1508
    %v1510 = vtanh.pop %v1509
    %v1511 = vmul.f32 %v1505, %v1510
    %v1512 = vmul.f32 %v1511, %v127
    %v1513 = vsel %vm300, %v1512, 0.0
    %1514 = vadd.xlane.f32.xlu0 %v1513
    %v1515 = vpop.xlane.xlu0 %1514
    %v1516 = vadd.f32 %v1515, %v304
    %vm1517 = vcmp.eq.s32.totalorder %v131, 7
    %v1518 = vsel %vm1517, %v1516, %v1345
    %vm1519 = vcmask 58368
    %1520 = vst.msk [vmem:[#allocation6] sm:$0x3] %vm1519, %v1518
    // Predicated region
    $region26: #{tpu_custom_call.1} parent=1 // pred_check
      _
    $region27: #{tpu_custom_call.1} parent=1 // pred_check_branch
      %1522 = sbr.rel (0) target = $region29
    $region28: #{tpu_custom_call.1} parent=1 // pred_region
      %s1524 = ssub.s32 32, 32
      %1525 = vsyncadd [#allocation5], %s1524
      %s1527 = sshll.u32 [#allocation6], 4
      %s1528 = int_to_ptr.vmem [resolvable:$true] %s1527
      %1530 = dma.vmem_to_hbm [thread:$0]  %s1528, 32, %s5, [#allocation5]
    $region29: #{tpu_custom_call.1} parent=1 // pred_fallthru
      _
    // Predicated region
    $region30: #{tpu_custom_call.1} parent=1 // pred_check
      _
    $region31: #{tpu_custom_call.1} parent=1 // pred_check_branch
      %1532 = sbr.rel (0) target = $region33
    $region32: #{tpu_custom_call.1} parent=1 // pred_region
      %1533 = dma.done [#allocation5], 32
    $region33: #{tpu_custom_call.1} parent=1 // pred_fallthru
      _
    %1534 = vsyncpa [#allocation4], 1
    %1535 = vsyncpa [#allocation5], 1

</llo_original>
